<compile_context>
chip_gen: v7x
topology: tpu7x:2x2x1
jax: 0.10.0
libtpu: 0.0.40
codegen_flags: <defaults>
</compile_context>

<pallas_src>
import functools

import jax
import jax.numpy as jnp
import numpy as np
from jax.experimental import pallas as pl
from jax.experimental.pallas import tpu as pltpu


EMBED = 128   # lane-dense demo embedding (module default 512 is also lane-dense;
              # the kernel is parameterized by Cout so either value works).


def _round_up(x, m):
    return ((x + m - 1) // m) * m


def _pick_tile(m, target=1024):
    """Largest multiple-of-8 divisor of m not exceeding `target` (else m).

    `target` bounds the double-buffered VMEM working set; raise it (e.g. 2048+)
    for large problems, keep the last-resort fallback (full m) for tiny ones.
    """
    if m <= target:
        return m
    best = m
    for t in range(8, target + 1, 8):
        if m % t == 0:
            best = t
    return best


# -----------------------------------------------------------------------------
# Fused kernel, grid = (M // TM,):
#   patch_ref : (TM, 9*Cin)  bf16 im2col rows of this tile
#   w_ref     : (9*Cin, Cout) bf16 reshaped HWIO conv weight
#   b_ref     : (1, Cout)     f32 bias
#   scores_ref: (POOL_ROWS, ACC_ROWS) f32  all-pairs scores (lane-dense width)
#   emb_ref   : (POOL_ROWS, Cout)     f32  embeddings (rows [:3B] valid)
#   acc_ref   : (ACC_ROWS, Cout)      f32  VMEM accumulator (rows >= 3B stay 0)
# -----------------------------------------------------------------------------
def _fused_kernel(patch_ref, w_ref, b_ref, scores_ref, emb_ref, acc_ref, *, HW):
    i = pl.program_id(0)
    TM = patch_ref.shape[0]
    POOL_ROWS = emb_ref.shape[0]

    @pl.when(i == 0)
    def _init():
        acc_ref[...] = jnp.zeros_like(acc_ref)

    # 3x3 "same" conv for this tile: ONE bf16 MXU matmul with f32 accumulation.
    y = jnp.dot(patch_ref[...], w_ref[...], preferred_element_type=jnp.float32)
    y = jnp.maximum(y + b_ref[...], 0.0)                        # bias + ReLU (f32)

    # Average-pool scatter for this tile as a tiny one-hot matmul built from
    # iota + image-boundary compares (no integer division, no HBM pool matrix).
    g = jax.lax.broadcasted_iota(jnp.int32, (POOL_ROWS, TM), 1) + i * TM
    r = jax.lax.broadcasted_iota(jnp.int32, (POOL_ROWS, TM), 0)
    lo = r * HW
    pool = jnp.where((g >= lo) & (g < lo + HW), 1.0 / HW, 0.0)  # (POOL_ROWS, TM) f32
    acc_ref[0:POOL_ROWS, :] = acc_ref[0:POOL_ROWS, :] + jnp.dot(
        pool, y, preferred_element_type=jnp.float32)

    # Epilogue on the last tile: embeddings + all pairwise scores, lane-dense.
    @pl.when(i == pl.num_programs(0) - 1)
    def _epilogue():
        acc = acc_ref[...]                                      # (ACC_ROWS, Cout)
        emb_ref[...] = acc[0:POOL_ROWS, :]
        # scores[i, j] = emb_i . emb_j  (rows >= 3B of acc are zero); contract
        # last dims so no explicit transpose; output width ACC_ROWS (mult of 128).
        scores_ref[...] = jax.lax.dot_general(
            acc[0:POOL_ROWS, :], acc, (((1,), (1,)), ((), ())),
            preferred_element_type=jnp.float32)


def _im2col(x_nhwc):
    """(N, H, W, C) -> (N*H*W, 9*C) patches for a 3x3 'same' conv."""
    N, H, W, C = x_nhwc.shape
    xp = jnp.pad(x_nhwc, ((0, 0), (1, 1), (1, 1), (0, 0)))      # zero "same" pad
    taps = [xp[:, ky:ky + H, kx:kx + W, :]
            for ky in range(3) for kx in range(3)]
    patches = jnp.stack(taps, axis=-2)                          # (N, H, W, 9, C)
    return patches.reshape(N * H * W, 9 * C)


# -----------------------------------------------------------------------------
# Model forward (squeeze=True path), matching the PyTorch semantics.
# -----------------------------------------------------------------------------
def model_forward(params, input1, input2, input3):
    """inputs are NCHW float32 (PyTorch convention)."""
    w = params["conv_w"]                        # (3, 3, Cin, Cout) HWIO
    b = params["conv_b"]                        # (Cout,)
    Cin, Cout = w.shape[2], w.shape[3]

    B, _, H, W = input1.shape
    HW = H * W
    x3 = input3 if input3 is not None else input2   # dummy third branch if absent

    # One stack + one transpose instead of three transposes + concat.
    x = jnp.stack([input1, input2, x3], axis=0).reshape(3 * B, Cin, H, W)
    x = jnp.transpose(x, (0, 2, 3, 1))          # (3B, H, W, Cin)

    patches = _im2col(x).astype(jnp.bfloat16)   # (M, 9*Cin) bf16 MXU input
    M = 3 * B * HW
    K = 9 * Cin
    TM = _pick_tile(M)
    POOL_ROWS = _round_up(3 * B, 8)             # sublane-padded image slots
    ACC_ROWS = _round_up(max(3 * B, 128), 128)  # lane-dense score width

    w2 = w.reshape(K, Cout).astype(jnp.bfloat16)
    b2 = b.reshape(1, Cout).astype(jnp.float32)

    cost = pl.CostEstimate(
        flops=2 * M * K * Cout + 2 * M * POOL_ROWS * Cout
              + 2 * POOL_ROWS * ACC_ROWS * Cout,
        transcendentals=0,
        bytes_accessed=M * K * 2 + K * Cout * 2 + Cout * 4
                       + POOL_ROWS * ACC_ROWS * 4 + POOL_ROWS * Cout * 4)

    kernel = functools.partial(_fused_kernel, HW=HW)
    scores, emb = pl.pallas_call(
        kernel,
        out_shape=(jax.ShapeDtypeStruct((POOL_ROWS, ACC_ROWS), jnp.float32),
                   jax.ShapeDtypeStruct((POOL_ROWS, Cout), jnp.float32)),
        grid=(M // TM,),
        in_specs=[
            pl.BlockSpec((TM, K), lambda i: (i, 0)),
            pl.BlockSpec((K, Cout), lambda i: (0, 0)),
            pl.BlockSpec((1, Cout), lambda i: (0, 0)),
        ],
        out_specs=(pl.BlockSpec((POOL_ROWS, ACC_ROWS), lambda i: (0, 0)),
                   pl.BlockSpec((POOL_ROWS, Cout), lambda i: (0, 0))),
        scratch_shapes=[pltpu.VMEM((ACC_ROWS, Cout), jnp.float32)],
        compiler_params=pltpu.CompilerParams(
            dimension_semantics=("arbitrary",),   # accumulator carried over M tiles
            vmem_limit_bytes=32 * 1024 * 1024),
        cost_estimate=cost,
    )(patches, w2, b2)

    anchor = emb[:B]                             # (B, Cout)
    if input3 is not None:
        positive = scores[:B, B:2 * B].reshape(-1)       # (anchor @ pos.T).view(-1)
        negative = scores[:B, 2 * B:3 * B].reshape(-1)   # (anchor @ neg.T).view(-1)
    else:
        # Module semantics when input3 is None: positive stays the pooled
        # embedding, negative is None (the in-kernel scores are simply unused).
        positive = emb[B:2 * B]
        negative = None
    return (positive, negative, anchor, positive, negative)


# -----------------------------------------------------------------------------
# Pure-JAX reference (same bf16-input / f32-accumulation precision as kernel).
# -----------------------------------------------------------------------------
def reference_forward(params, input1, input2, input3):
    w = params["conv_w"].astype(jnp.bfloat16)

    def enc(x_nchw):
        x = jnp.transpose(x_nchw, (0, 2, 3, 1)).astype(jnp.bfloat16)
        y = jax.lax.conv_general_dilated(
            x, w, window_strides=(1, 1), padding="SAME",
            dimension_numbers=("NHWC", "HWIO", "NHWC"),
            preferred_element_type=jnp.float32)
        y = jnp.maximum(y + params["conv_b"], 0.0)
        return jnp.mean(y, axis=(1, 2))

    anchor = enc(input1)
    positive_emb = enc(input2)
    negative_emb = enc(input3)
    positive = (anchor @ positive_emb.T).reshape(-1)
    negative = (anchor @ negative_emb.T).reshape(-1)
    return (positive, negative, anchor, positive, negative)


if __name__ == "__main__":
    # Small shapes: batch=2, channels=4, spatial=16x16, embed=128 (lane-dense).
    B, Cin, H, W = 2, 4, 16, 16

    key = jax.random.PRNGKey(0)
    k1, k2, k3, kw, kb = jax.random.split(key, 5)

    params = {
        "conv_w": (jax.random.normal(kw, (3, 3, Cin, EMBED), jnp.float32)
                   * (1.0 / np.sqrt(3 * 3 * Cin))),
        "conv_b": jax.random.normal(kb, (EMBED,), jnp.float32) * 0.01,
        # TODO(synk): fc1/fc2/relu1 from __init__ are unused in forward(); omitted.
    }

    input1 = jax.random.normal(k1, (B, Cin, H, W), jnp.float32)
    input2 = jax.random.normal(k2, (B, Cin, H, W), jnp.float32)
    input3 = jax.random.normal(k3, (B, Cin, H, W), jnp.float32)

    fwd = jax.jit(model_forward)
    out = fwd(params, input1, input2, input3)
    out = jax.block_until_ready(out)
    ref = reference_forward(params, input1, input2, input3)

    for got, want in zip((out[0], out[1], out[2]), (ref[0], ref[1], ref[2])):
        np.testing.assert_allclose(np.asarray(got), np.asarray(want),
                                   rtol=1e-3, atol=1e-3)

    print("KERNEL_OK")
</pallas_src>

<mosaic_0001>
module attributes {stable_mosaic.version = 11 : i64} {
  func.func @_fused_kernel(%arg0: i32, %arg1: memref<768x36xbf16, #tpu.memory_space<vmem>>, %arg2: memref<36x128xbf16, #tpu.memory_space<vmem>>, %arg3: memref<1x128xf32, #tpu.memory_space<vmem>>, %arg4: memref<8x128xf32, #tpu.memory_space<vmem>>, %arg5: memref<8x128xf32, #tpu.memory_space<vmem>>, %arg6: memref<128x128xf32, #tpu.memory_space<vmem>>) attributes {dimension_semantics = [#tpu.dimension_semantics<arbitrary>], iteration_bounds = array<i64: 2>, scalar_prefetch = 0 : i64, scratch_operands = 1 : i64, tpu.core_type = #tpu.core_type<tc>, window_params = [{transform_indices = @transform_0, window_bounds = array<i64: 768, 36>}, {pipeline_mode = #tpu.pipeline_mode<synchronous>, transform_indices = @transform_1, window_bounds = array<i64: 36, 128>}, {pipeline_mode = #tpu.pipeline_mode<synchronous>, transform_indices = @transform_2, window_bounds = array<i64: 1, 128>}, {pipeline_mode = #tpu.pipeline_mode<synchronous>, transform_indices = @transform_3, window_bounds = array<i64: 8, 128>}, {pipeline_mode = #tpu.pipeline_mode<synchronous>, transform_indices = @transform_4, window_bounds = array<i64: 8, 128>}]} {
    %c0_i32 = arith.constant 0 : i32
    %0 = arith.cmpi eq, %arg0, %c0_i32 : i32
    %1 = arith.extui %0 : i1 to i32
    %c0_i32_0 = arith.constant 0 : i32
    %2 = arith.cmpi ne, %1, %c0_i32_0 : i32
    scf.if %2 {
      %cst_16 = arith.constant 0.000000e+00 : f32
      %33 = vector.broadcast %cst_16 : f32 to vector<128x128xf32>
      %c0_17 = arith.constant 0 : index
      %c0_18 = arith.constant 0 : index
      %34 = vector.load %arg6[%c0_17, %c0_18] : memref<128x128xf32, #tpu.memory_space<vmem>>, vector<128x128xf32>
      tpu.vector_store %arg6[%c0_17, %c0_18], %33 {strides = array<i32>} : memref<128x128xf32, #tpu.memory_space<vmem>>, vector<128x128xf32>,
    } else {
    }
    %c0 = arith.constant 0 : index
    %c0_1 = arith.constant 0 : index
    %3 = vector.load %arg1[%c0, %c0_1] : memref<768x36xbf16, #tpu.memory_space<vmem>>, vector<768x36xbf16>
    %c0_2 = arith.constant 0 : index
    %c0_3 = arith.constant 0 : index
    %4 = vector.load %arg2[%c0_2, %c0_3] : memref<36x128xbf16, #tpu.memory_space<vmem>>, vector<36x128xbf16>
    %cst = arith.constant dense<0.000000e+00> : vector<768x128xf32>
    %5 = tpu.matmul %3, %4, %cst {dimension_numbers = #tpu.dot_dimension_numbers<[1], [0], [0], [1], [0, 0, 1, 1], [], []>} : vector<768x36xbf16>, vector<36x128xbf16>, vector<768x128xf32> -> vector<768x128xf32>
    %c0_4 = arith.constant 0 : index
    %c0_5 = arith.constant 0 : index
    %6 = vector.load %arg3[%c0_4, %c0_5] : memref<1x128xf32, #tpu.memory_space<vmem>>, vector<1x128xf32>
    %7 = vector.broadcast %6 : vector<1x128xf32> to vector<768x128xf32>
    %8 = arith.addf %5, %7 : vector<768x128xf32>
    %cst_6 = arith.constant 0.000000e+00 : f32
    %9 = vector.broadcast %cst_6 : f32 to vector<768x128xf32>
    %10 = arith.maximumf %8, %9 : vector<768x128xf32>
    %11 = tpu.iota {dimensions = array<i32: 1>} : vector<8x768xi32>
    %c768_i32 = arith.constant 768 : i32
    %12 = arith.muli %arg0, %c768_i32 : i32
    %13 = vector.broadcast %12 : i32 to vector<8x768xi32>
    %14 = arith.addi %11, %13 : vector<8x768xi32>
    %15 = tpu.iota {dimensions = array<i32: 0>} : vector<8x768xi32>
    %c256_i32 = arith.constant 256 : i32
    %16 = vector.broadcast %c256_i32 : i32 to vector<8x768xi32>
    %17 = arith.muli %15, %16 : vector<8x768xi32>
    %18 = arith.cmpi sge, %14, %17 : vector<8x768xi32>
    %c256_i32_7 = arith.constant 256 : i32
    %19 = vector.broadcast %c256_i32_7 : i32 to vector<8x768xi32>
    %20 = arith.addi %17, %19 : vector<8x768xi32>
    %21 = arith.cmpi slt, %14, %20 : vector<8x768xi32>
    %22 = arith.andi %18, %21 : vector<8x768xi1>
    %cst_8 = arith.constant 3.906250e-03 : f32
    %cst_9 = arith.constant 0.000000e+00 : f32
    %23 = vector.broadcast %cst_8 : f32 to vector<8x768xf32>
    %24 = vector.broadcast %cst_9 : f32 to vector<8x768xf32>
    %25 = arith.select %22, %23, %24 : vector<8x768xi1>, vector<8x768xf32>
    %c0_10 = arith.constant 0 : index
    %c0_11 = arith.constant 0 : index
    %26 = vector.load %arg6[%c0_10, %c0_11] : memref<128x128xf32, #tpu.memory_space<vmem>>, vector<8x128xf32>
    %cst_12 = arith.constant dense<0.000000e+00> : vector<8x128xf32>
    %27 = tpu.matmul %25, %10, %cst_12 {dimension_numbers = #tpu.dot_dimension_numbers<[1], [0], [0], [1], [0, 0, 1, 1], [], []>} : vector<8x768xf32>, vector<768x128xf32>, vector<8x128xf32> -> vector<8x128xf32>
    %28 = arith.addf %26, %27 : vector<8x128xf32>
    %c0_13 = arith.constant 0 : index
    %c0_14 = arith.constant 0 : index
    %29 = vector.load %arg6[%c0_13, %c0_14] : memref<128x128xf32, #tpu.memory_space<vmem>>, vector<8x128xf32>
    tpu.vector_store %arg6[%c0_13, %c0_14], %28 {strides = array<i32>} : memref<128x128xf32, #tpu.memory_space<vmem>>, vector<8x128xf32>,
    %c1_i32 = arith.constant 1 : i32
    %30 = arith.cmpi eq, %arg0, %c1_i32 : i32
    %31 = arith.extui %30 : i1 to i32
    %c0_i32_15 = arith.constant 0 : i32
    %32 = arith.cmpi ne, %31, %c0_i32_15 : i32
    scf.if %32 {
      %c0_16 = arith.constant 0 : index
      %c0_17 = arith.constant 0 : index
      %33 = vector.load %arg6[%c0_16, %c0_17] : memref<128x128xf32, #tpu.memory_space<vmem>>, vector<128x128xf32>
      %34 = vector.extract_strided_slice %33 {offsets = [0, 0], sizes = [8, 128], strides = [1, 1]} : vector<128x128xf32> to vector<8x128xf32>
      %c0_18 = arith.constant 0 : index
      %c0_19 = arith.constant 0 : index
      %35 = vector.load %arg5[%c0_18, %c0_19] : memref<8x128xf32, #tpu.memory_space<vmem>>, vector<8x128xf32>
      tpu.vector_store %arg5[%c0_18, %c0_19], %34 {strides = array<i32>} : memref<8x128xf32, #tpu.memory_space<vmem>>, vector<8x128xf32>,
      %36 = vector.extract_strided_slice %33 {offsets = [0, 0], sizes = [8, 128], strides = [1, 1]} : vector<128x128xf32> to vector<8x128xf32>
      %cst_20 = arith.constant dense<0.000000e+00> : vector<8x128xf32>
      %37 = tpu.matmul %36, %33, %cst_20 {dimension_numbers = #tpu.dot_dimension_numbers<[1], [1], [0], [0], [0, 0, 1, 0], [], []>} : vector<8x128xf32>, vector<128x128xf32>, vector<8x128xf32> -> vector<8x128xf32>
      %c0_21 = arith.constant 0 : index
      %c0_22 = arith.constant 0 : index
      %38 = vector.load %arg4[%c0_21, %c0_22] : memref<8x128xf32, #tpu.memory_space<vmem>>, vector<8x128xf32>
      tpu.vector_store %arg4[%c0_21, %c0_22], %37 {strides = array<i32>} : memref<8x128xf32, #tpu.memory_space<vmem>>, vector<8x128xf32>,
    } else {
    }
    return
  }
  func.func @transform_0(%arg0: i32) -> (i32, i32) {
    %c0_i32 = arith.constant 0 : i32
    %c0_i32_0 = arith.constant 0 : i32
    return %arg0, %c0_i32 : i32, i32
  }
  func.func @transform_1(%arg0: i32) -> (i32, i32) {
    %c0_i32 = arith.constant 0 : i32
    %c0_i32_0 = arith.constant 0 : i32
    %c0_i32_1 = arith.constant 0 : i32
    return %c0_i32, %c0_i32_0 : i32, i32
  }
  func.func @transform_2(%arg0: i32) -> (i32, i32) {
    %c0_i32 = arith.constant 0 : i32
    %c0_i32_0 = arith.constant 0 : i32
    %c0_i32_1 = arith.constant 0 : i32
    return %c0_i32, %c0_i32_0 : i32, i32
  }
  func.func @transform_3(%arg0: i32) -> (i32, i32) {
    %c0_i32 = arith.constant 0 : i32
    %c0_i32_0 = arith.constant 0 : i32
    %c0_i32_1 = arith.constant 0 : i32
    return %c0_i32, %c0_i32_0 : i32, i32
  }
  func.func @transform_4(%arg0: i32) -> (i32, i32) {
    %c0_i32 = arith.constant 0 : i32
    %c0_i32_0 = arith.constant 0 : i32
    %c0_i32_1 = arith.constant 0 : i32
    return %c0_i32, %c0_i32_0 : i32, i32
  }
}

</mosaic_0001>

<llo_original>
// kernel: model_forward.1
$region0: #{model_forward.1}
  #allocation0 [shape = 'u32[]', space=smem, size = 0x4, offset = 0x4, fixed_abs, tag = 'smem constant byte address 0x4 - core index']
  #allocation1 [shape = 'u32[144,128]{1,0:T(1,128)}', space=vmem, size = 0x12000, scoped, tag = 'internal scratch']
  #allocation2 [shape = 'f32[128,128]{1,0:T(8,128)}', space=vmem, size = 0x10000, scoped, tag = 'scratch operand']
  %s0 = inlined_call_operand.vmem [shape: bf16[1536,36], index: 0, kind: input, shape index: {}]
  %s1 = inlined_call_operand.vmem [shape: bf16[36,128], index: 1, kind: input, shape index: {}]
  %s2 = inlined_call_operand.vmem [shape: f32[1,128], index: 2, kind: input, shape index: {}]
  %s3 = inlined_call_operand.vmem [shape: f32[8,128], index: 3, kind: output, shape index: {0}]
  %s4 = inlined_call_operand.vmem [shape: f32[8,128], index: 4, kind: output, shape index: {1}]
  %5 = xla_tuple %s3, %s4
  %s6 = sld [smem:[#allocation0]]
  $region61: #{model_forward.1} parent=0
    _
  %s8 = ssub.s32 1, %s6
  %s9 = scalar_select 0, %s8, %s6
  loop: start=0, step=1, limit=4
  $region2: #{model_forward.1} parent=0 // loop_pre_header
    _
  $region3: #{model_forward.1} parent=0 // loop_header
    %s11 = sphi 0, %s15
    %p12 = scmp.ge.s32.totalorder %s11, 4
    %s21 = sphi 0, %s23
    %s24 = sphi 0, %s21
    %s25 = sphi 0, %s24
    %s41 = sphi 0, %s25
    %s45 = sphi 0, %s45
    %s47 = sphi 0, %s45
    %s48 = sphi 0, %s47
    %s62 = sphi 0, %s48
    %s66 = sphi 0, %s66
    %s68 = sphi 0, %s66
    %s69 = sphi 0, %s68
    %s83 = sphi 0, %s69
    %s87 = sphi 0, %s87
    %s89 = sphi 0, %s87
    %s90 = sphi 0, %s89
    %s104 = sphi 0, %s90
    %s108 = sphi 0, %s108
    %s110 = sphi 0, %s108
    %s111 = sphi 0, %s110
    %s125 = sphi 0, %s111
  $region4: #{model_forward.1} parent=0 // loop_header_branch
    %14 = sbr.rel (%p12) target = $region8
  $region5: #{model_forward.1} parent=0 // loop_body
    %s16 = ssub.s32 %s11, 1
    %s17 = ssub.s32 %s11, 2
    %s18 = sadd.s32 %s11, 1
    %s19 = ssub.s32 %s11, %s18
    %p20 = scmp.eq.s32.totalorder %s19, 0
    %s22 = sadd.s32 %s21, 1
    %s23 = scalar_select %p20, %s21, %s22
    %p26 = pneg %p20
    %p27 = scmp.eq.s32.totalorder %s11, 1
    %p28 = por %p26, %p27
    %p29 = scmp.ne.s32.totalorder %s21, %s24
    %p30 = scmp.eq.s32.totalorder %s11, 0
    %p31 = por %p29, %p30
    %p32 = scmp.ne.s32.totalorder %s21, %s24
    %p33 = scmp.eq.s32.totalorder %s16, 1
    %p34 = por %p32, %p33
    %p35 = scmp.ne.s32.totalorder %s24, %s25
    %p36 = scmp.eq.s32.totalorder %s16, 0
    %p37 = por %p35, %p36
    %p38 = scmp.ne.s32.totalorder %s24, %s25
    %p39 = scmp.eq.s32.totalorder %s17, 1
    %p40 = por %p38, %p39
    %p42 = scmp.ne.s32.totalorder %s25, %s41
    %p43 = scmp.eq.s32.totalorder %s17, 0
    %p44 = por %p42, %p43
    %s46 = sadd.s32 %s45, 1
    %p49 = scmp.eq.s32.totalorder %s11, 1
    %p50 = scmp.ne.s32.totalorder %s45, %s47
    %p51 = scmp.eq.s32.totalorder %s11, 0
    %p52 = por %p50, %p51
    %p53 = scmp.ne.s32.totalorder %s45, %s47
    %p54 = scmp.eq.s32.totalorder %s16, 1
    %p55 = por %p53, %p54
    %p56 = scmp.ne.s32.totalorder %s47, %s48
    %p57 = scmp.eq.s32.totalorder %s16, 0
    %p58 = por %p56, %p57
    %p59 = scmp.ne.s32.totalorder %s47, %s48
    %p60 = scmp.eq.s32.totalorder %s17, 1
    %p61 = por %p59, %p60
    %p63 = scmp.ne.s32.totalorder %s48, %s62
    %p64 = scmp.eq.s32.totalorder %s17, 0
    %p65 = por %p63, %p64
    %s67 = sadd.s32 %s66, 1
    %p70 = scmp.eq.s32.totalorder %s11, 1
    %p71 = scmp.ne.s32.totalorder %s66, %s68
    %p72 = scmp.eq.s32.totalorder %s11, 0
    %p73 = por %p71, %p72
    %p74 = scmp.ne.s32.totalorder %s66, %s68
    %p75 = scmp.eq.s32.totalorder %s16, 1
    %p76 = por %p74, %p75
    %p77 = scmp.ne.s32.totalorder %s68, %s69
    %p78 = scmp.eq.s32.totalorder %s16, 0
    %p79 = por %p77, %p78
    %p80 = scmp.ne.s32.totalorder %s68, %s69
    %p81 = scmp.eq.s32.totalorder %s17, 1
    %p82 = por %p80, %p81
    %p84 = scmp.ne.s32.totalorder %s69, %s83
    %p85 = scmp.eq.s32.totalorder %s17, 0
    %p86 = por %p84, %p85
    %s88 = sadd.s32 %s87, 1
    %p91 = scmp.eq.s32.totalorder %s11, 1
    %p92 = scmp.ne.s32.totalorder %s87, %s89
    %p93 = scmp.eq.s32.totalorder %s11, 0
    %p94 = por %p92, %p93
    %p95 = scmp.ne.s32.totalorder %s87, %s89
    %p96 = scmp.eq.s32.totalorder %s16, 1
    %p97 = por %p95, %p96
    %p98 = scmp.ne.s32.totalorder %s89, %s90
    %p99 = scmp.eq.s32.totalorder %s16, 0
    %p100 = por %p98, %p99
    %p101 = scmp.ne.s32.totalorder %s89, %s90
    %p102 = scmp.eq.s32.totalorder %s17, 1
    %p103 = por %p101, %p102
    %p105 = scmp.ne.s32.totalorder %s90, %s104
    %p106 = scmp.eq.s32.totalorder %s17, 0
    %p107 = por %p105, %p106
    %s109 = sadd.s32 %s108, 1
    %p112 = scmp.eq.s32.totalorder %s11, 1
    %p113 = scmp.ne.s32.totalorder %s108, %s110
    %p114 = scmp.eq.s32.totalorder %s11, 0
    %p115 = por %p113, %p114
    %p116 = scmp.ne.s32.totalorder %s108, %s110
    %p117 = scmp.eq.s32.totalorder %s16, 1
    %p118 = por %p116, %p117
    %p119 = scmp.ne.s32.totalorder %s110, %s111
    %p120 = scmp.eq.s32.totalorder %s16, 0
    %p121 = por %p119, %p120
    %p122 = scmp.ne.s32.totalorder %s110, %s111
    %p123 = scmp.eq.s32.totalorder %s17, 1
    %p124 = por %p122, %p123
    %p126 = scmp.ne.s32.totalorder %s111, %s125
    %p127 = scmp.eq.s32.totalorder %s17, 0
    %p128 = por %p126, %p127
    %p129 = scmp.le.s32.totalorder 1, %s11
    %p130 = scmp.lt.s32.totalorder %s11, 3
    %p131 = pnand %p129, %p130
    %p132 = pneg %p131
    // Predicated region
    $region9: #{model_forward.1} parent=5 // pred_check
      _
    $region10: #{model_forward.1} parent=5 // pred_check_branch
      %134 = sbr.rel (%p131) target = $region12
    $region11: #{model_forward.1} parent=5 // pred_region
      %s135 = ssub.s32 %s11, 1
      // Predicated region
      $region13: #{model_forward.1} parent=11 // pred_check
        %p136 = pneg %p58
      $region14: #{model_forward.1} parent=11 // pred_check_branch
        %138 = sbr.rel (%p136) target = $region16
      $region15: #{model_forward.1} parent=11 // pred_region
        _
      $region16: #{model_forward.1} parent=11 // pred_fallthru
        _
      // Predicated region
      $region17: #{model_forward.1} parent=11 // pred_check
        %p139 = pneg %p79
      $region18: #{model_forward.1} parent=11 // pred_check_branch
        %141 = sbr.rel (%p139) target = $region20
      $region19: #{model_forward.1} parent=11 // pred_region
        _
      $region20: #{model_forward.1} parent=11 // pred_fallthru
        _
    $region12: #{model_forward.1} parent=5 // pred_fallthru
      _
    %p142 = scmp.lt.s32.totalorder %s11, 2
    // Predicated region
    $region21: #{model_forward.1} parent=5 // pred_check
      %p143 = pneg %p142
    $region22: #{model_forward.1} parent=5 // pred_check_branch
      %145 = sbr.rel (%p143) target = $region24
    $region23: #{model_forward.1} parent=5 // pred_region
      // Predicated region
      $region25: #{model_forward.1} parent=23 // pred_check
        %p146 = pneg %p31
      $region26: #{model_forward.1} parent=23 // pred_check_branch
        %148 = sbr.rel (%p146) target = $region28
      $region27: #{model_forward.1} parent=23 // pred_region
        %s149 = smul.u32 96, %s11
        %p150 = scmp.lt.s32.totalorder %s149, 191
        %s151 = scalar_select %p150, %s149, 191
        %s152 = smul.addr %s151, 4
        %s153 = scalar_lea.vmem %s0, %s152
        %s154 = smul.u32 96, %s11
      $region28: #{model_forward.1} parent=23 // pred_fallthru
        _
    $region24: #{model_forward.1} parent=5 // pred_fallthru
      _
    %p155 = scmp.le.s32.totalorder 1, %s11
    %p156 = scmp.lt.s32.totalorder %s11, 3
    %p157 = pnand %p155, %p156
    %p158 = pneg %p157
    // Predicated region
    $region29: #{model_forward.1} parent=5 // pred_check
      _
    $region30: #{model_forward.1} parent=5 // pred_check_branch
      %160 = sbr.rel (%p157) target = $region32
    $region31: #{model_forward.1} parent=5 // pred_region
      %s161 = ssub.s32 %s11, 1
      %s162 = smul.u32 96, %s16
      %p163 = scmp.lt.s32.totalorder %s162, 191
      %s164 = scalar_select %p163, %s162, 191
      %s165 = smul.addr %s164, 4
      %s166 = scalar_lea.vmem %s0, %s165
      %p167 = pneg %p37
      %p168 = pneg %p34
      %p169 = pneg %p58
      %p170 = pneg %p55
      %p171 = pneg %p79
      %p172 = pneg %p76
      %p173 = pneg %p100
      %p174 = pneg %p97
      %p175 = pneg %p121
      %p176 = pneg %p118
      %s177 = smul.u32 96, %s16
      %p178 = scmp.lt.s32.totalorder %s177, 191
      %s179 = scalar_select %p178, %s177, 191
      %s180 = smul.addr %s179, 4
      %s181 = scalar_lea.vmem %s0, %s180
      %s182 = smul.u32 96, %s16
      %p184 = scmp.eq.s32.totalorder %s16, 0
      // Predicated region
      $region33: #{model_forward.1} parent=31 // pred_check
        %p185 = pneg %p184
      $region34: #{model_forward.1} parent=31 // pred_check_branch
        %187 = sbr.rel (%p185) target = $region36
      $region35: #{model_forward.1} parent=31 // pred_region
        %188 = vst [vmem:[#allocation2] sm:$0xff] 0.0
        %189 = vst [vmem:[#allocation2 + $0x8] sm:$0xff] 0.0
        %190 = vst [vmem:[#allocation2 + $0x10] sm:$0xff] 0.0
        %191 = vst [vmem:[#allocation2 + $0x18] sm:$0xff] 0.0
        %192 = vst [vmem:[#allocation2 + $0x20] sm:$0xff] 0.0
        %193 = vst [vmem:[#allocation2 + $0x28] sm:$0xff] 0.0
        %194 = vst [vmem:[#allocation2 + $0x30] sm:$0xff] 0.0
        %195 = vst [vmem:[#allocation2 + $0x38] sm:$0xff] 0.0
        %196 = vst [vmem:[#allocation2 + $0x40] sm:$0xff] 0.0
        %197 = vst [vmem:[#allocation2 + $0x48] sm:$0xff] 0.0
        %198 = vst [vmem:[#allocation2 + $0x50] sm:$0xff] 0.0
        %199 = vst [vmem:[#allocation2 + $0x58] sm:$0xff] 0.0
        %200 = vst [vmem:[#allocation2 + $0x60] sm:$0xff] 0.0
        %201 = vst [vmem:[#allocation2 + $0x68] sm:$0xff] 0.0
        %202 = vst [vmem:[#allocation2 + $0x70] sm:$0xff] 0.0
        %203 = vst [vmem:[#allocation2 + $0x78] sm:$0xff] 0.0
      $region36: #{model_forward.1} parent=31 // pred_fallthru
        _
      %v204 = vld [vmem:[%s181] sm:$0xf]
      %v205 = vld [vmem:[%s181 + $0x4] sm:$0xf]
      %v206 = vld [vmem:[%s181 + $0x8] sm:$0xf]
      %v207 = vld [vmem:[%s181 + $0xc] sm:$0xf]
      %v208 = vld [vmem:[%s181 + $0x10] sm:$0xf]
      %v209 = vld [vmem:[%s181 + $0x14] sm:$0xf]
      %v210 = vld [vmem:[%s181 + $0x18] sm:$0xf]
      %v211 = vld [vmem:[%s181 + $0x1c] sm:$0xf]
      %v212 = vld [vmem:[%s181 + $0x20] sm:$0xf]
      %v213 = vld [vmem:[%s181 + $0x24] sm:$0xf]
      %v214 = vld [vmem:[%s181 + $0x28] sm:$0xf]
      %v215 = vld [vmem:[%s181 + $0x2c] sm:$0xf]
      %v216 = vld [vmem:[%s181 + $0x30] sm:$0xf]
      %v217 = vld [vmem:[%s181 + $0x34] sm:$0xf]
      %v218 = vld [vmem:[%s181 + $0x38] sm:$0xf]
      %v219 = vld [vmem:[%s181 + $0x3c] sm:$0xf]
      %v220 = vld [vmem:[%s181 + $0x40] sm:$0xf]
      %v221 = vld [vmem:[%s181 + $0x44] sm:$0xf]
      %v222 = vld [vmem:[%s181 + $0x48] sm:$0xf]
      %v223 = vld [vmem:[%s181 + $0x4c] sm:$0xf]
      %v224 = vld [vmem:[%s181 + $0x50] sm:$0xf]
      %v225 = vld [vmem:[%s181 + $0x54] sm:$0xf]
      %v226 = vld [vmem:[%s181 + $0x58] sm:$0xf]
      %v227 = vld [vmem:[%s181 + $0x5c] sm:$0xf]
      %v228 = vld [vmem:[%s181 + $0x60] sm:$0xf]
      %v229 = vld [vmem:[%s181 + $0x64] sm:$0xf]
      %v230 = vld [vmem:[%s181 + $0x68] sm:$0xf]
      %v231 = vld [vmem:[%s181 + $0x6c] sm:$0xf]
      %v232 = vld [vmem:[%s181 + $0x70] sm:$0xf]
      %v233 = vld [vmem:[%s181 + $0x74] sm:$0xf]
      %v234 = vld [vmem:[%s181 + $0x78] sm:$0xf]
      %v235 = vld [vmem:[%s181 + $0x7c] sm:$0xf]
      %v236 = vld [vmem:[%s181 + $0x80] sm:$0xf]
      %v237 = vld [vmem:[%s181 + $0x84] sm:$0xf]
      %v238 = vld [vmem:[%s181 + $0x88] sm:$0xf]
      %v239 = vld [vmem:[%s181 + $0x8c] sm:$0xf]
      %v240 = vld [vmem:[%s181 + $0x90] sm:$0xf]
      %v241 = vld [vmem:[%s181 + $0x94] sm:$0xf]
      %v242 = vld [vmem:[%s181 + $0x98] sm:$0xf]
      %v243 = vld [vmem:[%s181 + $0x9c] sm:$0xf]
      %v244 = vld [vmem:[%s181 + $0xa0] sm:$0xf]
      %v245 = vld [vmem:[%s181 + $0xa4] sm:$0xf]
      %v246 = vld [vmem:[%s181 + $0xa8] sm:$0xf]
      %v247 = vld [vmem:[%s181 + $0xac] sm:$0xf]
      %v248 = vld [vmem:[%s181 + $0xb0] sm:$0xf]
      %v249 = vld [vmem:[%s181 + $0xb4] sm:$0xf]
      %v250 = vld [vmem:[%s181 + $0xb8] sm:$0xf]
      %v251 = vld [vmem:[%s181 + $0xbc] sm:$0xf]
      %v252 = vld [vmem:[%s181 + $0xc0] sm:$0xf]
      %v253 = vld [vmem:[%s181 + $0xc4] sm:$0xf]
      %v254 = vld [vmem:[%s181 + $0xc8] sm:$0xf]
      %v255 = vld [vmem:[%s181 + $0xcc] sm:$0xf]
      %v256 = vld [vmem:[%s181 + $0xd0] sm:$0xf]
      %v257 = vld [vmem:[%s181 + $0xd4] sm:$0xf]
      %v258 = vld [vmem:[%s181 + $0xd8] sm:$0xf]
      %v259 = vld [vmem:[%s181 + $0xdc] sm:$0xf]
      %v260 = vld [vmem:[%s181 + $0xe0] sm:$0xf]
      %v261 = vld [vmem:[%s181 + $0xe4] sm:$0xf]
      %v262 = vld [vmem:[%s181 + $0xe8] sm:$0xf]
      %v263 = vld [vmem:[%s181 + $0xec] sm:$0xf]
      %v264 = vld [vmem:[%s181 + $0xf0] sm:$0xf]
      %v265 = vld [vmem:[%s181 + $0xf4] sm:$0xf]
      %v266 = vld [vmem:[%s181 + $0xf8] sm:$0xf]
      %v267 = vld [vmem:[%s181 + $0xfc] sm:$0xf]
      %v268 = vld [vmem:[%s181 + $0x100] sm:$0xf]
      %v269 = vld [vmem:[%s181 + $0x104] sm:$0xf]
      %v270 = vld [vmem:[%s181 + $0x108] sm:$0xf]
      %v271 = vld [vmem:[%s181 + $0x10c] sm:$0xf]
      %v272 = vld [vmem:[%s181 + $0x110] sm:$0xf]
      %v273 = vld [vmem:[%s181 + $0x114] sm:$0xf]
      %v274 = vld [vmem:[%s181 + $0x118] sm:$0xf]
      %v275 = vld [vmem:[%s181 + $0x11c] sm:$0xf]
      %v276 = vld [vmem:[%s181 + $0x120] sm:$0xf]
      %v277 = vld [vmem:[%s181 + $0x124] sm:$0xf]
      %v278 = vld [vmem:[%s181 + $0x128] sm:$0xf]
      %v279 = vld [vmem:[%s181 + $0x12c] sm:$0xf]
      %v280 = vld [vmem:[%s181 + $0x130] sm:$0xf]
      %v281 = vld [vmem:[%s181 + $0x134] sm:$0xf]
      %v282 = vld [vmem:[%s181 + $0x138] sm:$0xf]
      %v283 = vld [vmem:[%s181 + $0x13c] sm:$0xf]
      %v284 = vld [vmem:[%s181 + $0x140] sm:$0xf]
      %v285 = vld [vmem:[%s181 + $0x144] sm:$0xf]
      %v286 = vld [vmem:[%s181 + $0x148] sm:$0xf]
      %v287 = vld [vmem:[%s181 + $0x14c] sm:$0xf]
      %v288 = vld [vmem:[%s181 + $0x150] sm:$0xf]
      %v289 = vld [vmem:[%s181 + $0x154] sm:$0xf]
      %v290 = vld [vmem:[%s181 + $0x158] sm:$0xf]
      %v291 = vld [vmem:[%s181 + $0x15c] sm:$0xf]
      %v292 = vld [vmem:[%s181 + $0x160] sm:$0xf]
      %v293 = vld [vmem:[%s181 + $0x164] sm:$0xf]
      %v294 = vld [vmem:[%s181 + $0x168] sm:$0xf]
      %v295 = vld [vmem:[%s181 + $0x16c] sm:$0xf]
      %v296 = vld [vmem:[%s181 + $0x170] sm:$0xf]
      %v297 = vld [vmem:[%s181 + $0x174] sm:$0xf]
      %v298 = vld [vmem:[%s181 + $0x178] sm:$0xf]
      %v299 = vld [vmem:[%s181 + $0x17c] sm:$0xf]
      %v300 = vld [vmem:[%s1] sm:$0xf]
      %v301 = vld [vmem:[%s1 + $0x4] sm:$0xf]
      %v302 = vld [vmem:[%s1 + $0x8] sm:$0xf]
      %v303 = vld [vmem:[%s1 + $0xc] sm:$0xf]
      %v304 = vld [vmem:[%s1 + $0x10] sm:$0x3]
      %v305 = vld [vmem:[%s2] sm:$0x1]
      %v307 = vlaneseq
      %v308 = vshrl.u32 %v307, 7
      %v309 = vsub.s32 0, %v308
      %v310 = vrot.slane %v305, %v309
      %v408 = vunpack.c.l.b16 %v204
      %v409 = vunpack.c.l.b16 %v205
      %v410 = vunpack.c.l.b16 %v206
      %v411 = vunpack.c.l.b16 %v207
      %v412 = vunpack.c.l.b16 %v208
      %v413 = vunpack.c.l.b16 %v209
      %v414 = vunpack.c.l.b16 %v210
      %v415 = vunpack.c.l.b16 %v211
      %v416 = vunpack.c.l.b16 %v212
      %v417 = vunpack.c.l.b16 %v213
      %v418 = vunpack.c.l.b16 %v214
      %v419 = vunpack.c.l.b16 %v215
      %v420 = vunpack.c.l.b16 %v216
      %v421 = vunpack.c.l.b16 %v217
      %v422 = vunpack.c.l.b16 %v218
      %v423 = vunpack.c.l.b16 %v219
      %v424 = vunpack.c.l.b16 %v220
      %v425 = vunpack.c.l.b16 %v221
      %v426 = vunpack.c.l.b16 %v222
      %v427 = vunpack.c.l.b16 %v223
      %v428 = vunpack.c.l.b16 %v224
      %v429 = vunpack.c.l.b16 %v225
      %v430 = vunpack.c.l.b16 %v226
      %v431 = vunpack.c.l.b16 %v227
      %v432 = vunpack.c.l.b16 %v228
      %v433 = vunpack.c.l.b16 %v229
      %v434 = vunpack.c.l.b16 %v230
      %v435 = vunpack.c.l.b16 %v231
      %v436 = vunpack.c.l.b16 %v232
      %v437 = vunpack.c.l.b16 %v233
      %v438 = vunpack.c.l.b16 %v234
      %v439 = vunpack.c.l.b16 %v235
      %v440 = vunpack.c.l.b16 %v236
      %v441 = vunpack.c.l.b16 %v237
      %v442 = vunpack.c.l.b16 %v238
      %v443 = vunpack.c.l.b16 %v239
      %v444 = vunpack.c.l.b16 %v240
      %v445 = vunpack.c.l.b16 %v241
      %v446 = vunpack.c.l.b16 %v242
      %v447 = vunpack.c.l.b16 %v243
      %v448 = vunpack.c.l.b16 %v244
      %v449 = vunpack.c.l.b16 %v245
      %v450 = vunpack.c.l.b16 %v246
      %v451 = vunpack.c.l.b16 %v247
      %v452 = vunpack.c.l.b16 %v248
      %v453 = vunpack.c.l.b16 %v249
      %v454 = vunpack.c.l.b16 %v250
      %v455 = vunpack.c.l.b16 %v251
      %v456 = vunpack.c.l.b16 %v252
      %v457 = vunpack.c.l.b16 %v253
      %v458 = vunpack.c.l.b16 %v254
      %v459 = vunpack.c.l.b16 %v255
      %v460 = vunpack.c.l.b16 %v256
      %v461 = vunpack.c.l.b16 %v257
      %v462 = vunpack.c.l.b16 %v258
      %v463 = vunpack.c.l.b16 %v259
      %v464 = vunpack.c.l.b16 %v260
      %v465 = vunpack.c.l.b16 %v261
      %v466 = vunpack.c.l.b16 %v262
      %v467 = vunpack.c.l.b16 %v263
      %v468 = vunpack.c.l.b16 %v264
      %v469 = vunpack.c.l.b16 %v265
      %v470 = vunpack.c.l.b16 %v266
      %v471 = vunpack.c.l.b16 %v267
      %v472 = vunpack.c.l.b16 %v268
      %v473 = vunpack.c.l.b16 %v269
      %v474 = vunpack.c.l.b16 %v270
      %v475 = vunpack.c.l.b16 %v271
      %v476 = vunpack.c.l.b16 %v272
      %v477 = vunpack.c.l.b16 %v273
      %v478 = vunpack.c.l.b16 %v274
      %v479 = vunpack.c.l.b16 %v275
      %v480 = vunpack.c.l.b16 %v276
      %v481 = vunpack.c.l.b16 %v277
      %v482 = vunpack.c.l.b16 %v278
      %v483 = vunpack.c.l.b16 %v279
      %v484 = vunpack.c.l.b16 %v280
      %v485 = vunpack.c.l.b16 %v281
      %v486 = vunpack.c.l.b16 %v282
      %v487 = vunpack.c.l.b16 %v283
      %v488 = vunpack.c.l.b16 %v284
      %v489 = vunpack.c.l.b16 %v285
      %v490 = vunpack.c.l.b16 %v286
      %v491 = vunpack.c.l.b16 %v287
      %v492 = vunpack.c.l.b16 %v288
      %v493 = vunpack.c.l.b16 %v289
      %v494 = vunpack.c.l.b16 %v290
      %v495 = vunpack.c.l.b16 %v291
      %v496 = vunpack.c.l.b16 %v292
      %v497 = vunpack.c.l.b16 %v293
      %v498 = vunpack.c.l.b16 %v294
      %v499 = vunpack.c.l.b16 %v295
      %v500 = vunpack.c.l.b16 %v296
      %v501 = vunpack.c.l.b16 %v297
      %v502 = vunpack.c.l.b16 %v298
      %v503 = vunpack.c.l.b16 %v299
      %v504 = vpack.c.b16 %v409, %v408
      %v505 = vpack.c.b16 %v411, %v410
      %v506 = vpack.c.b16 %v413, %v412
      %v507 = vpack.c.b16 %v415, %v414
      %v508 = vpack.c.b16 %v417, %v416
      %v509 = vpack.c.b16 %v419, %v418
      %v510 = vpack.c.b16 %v421, %v420
      %v511 = vpack.c.b16 %v423, %v422
      %v512 = vpack.c.b16 %v425, %v424
      %v513 = vpack.c.b16 %v427, %v426
      %v514 = vpack.c.b16 %v429, %v428
      %v515 = vpack.c.b16 %v431, %v430
      %v516 = vpack.c.b16 %v433, %v432
      %v517 = vpack.c.b16 %v435, %v434
      %v518 = vpack.c.b16 %v437, %v436
      %v519 = vpack.c.b16 %v439, %v438
      %v520 = vpack.c.b16 %v441, %v440
      %v521 = vpack.c.b16 %v443, %v442
      %v522 = vpack.c.b16 %v445, %v444
      %v523 = vpack.c.b16 %v447, %v446
      %v524 = vpack.c.b16 %v449, %v448
      %v525 = vpack.c.b16 %v451, %v450
      %v526 = vpack.c.b16 %v453, %v452
      %v527 = vpack.c.b16 %v455, %v454
      %v528 = vpack.c.b16 %v457, %v456
      %v529 = vpack.c.b16 %v459, %v458
      %v530 = vpack.c.b16 %v461, %v460
      %v531 = vpack.c.b16 %v463, %v462
      %v532 = vpack.c.b16 %v465, %v464
      %v533 = vpack.c.b16 %v467, %v466
      %v534 = vpack.c.b16 %v469, %v468
      %v535 = vpack.c.b16 %v471, %v470
      %v536 = vpack.c.b16 %v473, %v472
      %v537 = vpack.c.b16 %v475, %v474
      %v538 = vpack.c.b16 %v477, %v476
      %v539 = vpack.c.b16 %v479, %v478
      %v540 = vpack.c.b16 %v481, %v480
      %v541 = vpack.c.b16 %v483, %v482
      %v542 = vpack.c.b16 %v485, %v484
      %v543 = vpack.c.b16 %v487, %v486
      %v544 = vpack.c.b16 %v489, %v488
      %v545 = vpack.c.b16 %v491, %v490
      %v546 = vpack.c.b16 %v493, %v492
      %v547 = vpack.c.b16 %v495, %v494
      %v548 = vpack.c.b16 %v497, %v496
      %v549 = vpack.c.b16 %v499, %v498
      %v550 = vpack.c.b16 %v501, %v500
      %v551 = vpack.c.b16 %v503, %v502
      %v557 = vunpack.c.l.b16 %v300
      %v558 = vunpack.c.l.b16 %v301
      %v559 = vunpack.c.l.b16 %v302
      %v560 = vunpack.c.l.b16 %v303
      %v561 = vunpack.c.l.b16 %v304
      %v562 = vpack.c.b16 %v558, %v557
      %v563 = vpack.c.b16 %v560, %v559
      %v564 = vpack.c.b16 %v561, %v561
      %vm567 = vcmask 293888
      %v569 = vsel %vm567, %v504, 0
      %v572 = vsel %vm567, %v505, 0
      %v575 = vsel %vm567, %v506, 0
      %v578 = vsel %vm567, %v507, 0
      %v581 = vsel %vm567, %v508, 0
      %v584 = vsel %vm567, %v509, 0
      %v587 = vsel %vm567, %v510, 0
      %v590 = vsel %vm567, %v511, 0
      %v593 = vsel %vm567, %v512, 0
      %v596 = vsel %vm567, %v513, 0
      %v599 = vsel %vm567, %v514, 0
      %v602 = vsel %vm567, %v515, 0
      %v605 = vsel %vm567, %v516, 0
      %v608 = vsel %vm567, %v517, 0
      %v611 = vsel %vm567, %v518, 0
      %v614 = vsel %vm567, %v519, 0
      %v617 = vsel %vm567, %v520, 0
      %v620 = vsel %vm567, %v521, 0
      %v623 = vsel %vm567, %v522, 0
      %v626 = vsel %vm567, %v523, 0
      %v629 = vsel %vm567, %v524, 0
      %v632 = vsel %vm567, %v525, 0
      %v635 = vsel %vm567, %v526, 0
      %v638 = vsel %vm567, %v527, 0
      %v641 = vsel %vm567, %v528, 0
      %v644 = vsel %vm567, %v529, 0
      %v647 = vsel %vm567, %v530, 0
      %v650 = vsel %vm567, %v531, 0
      %v653 = vsel %vm567, %v532, 0
      %v656 = vsel %vm567, %v533, 0
      %v659 = vsel %vm567, %v534, 0
      %v662 = vsel %vm567, %v535, 0
      %v665 = vsel %vm567, %v536, 0
      %v668 = vsel %vm567, %v537, 0
      %v671 = vsel %vm567, %v538, 0
      %v674 = vsel %vm567, %v539, 0
      %v677 = vsel %vm567, %v540, 0
      %v680 = vsel %vm567, %v541, 0
      %v683 = vsel %vm567, %v542, 0
      %v686 = vsel %vm567, %v543, 0
      %v689 = vsel %vm567, %v544, 0
      %v692 = vsel %vm567, %v545, 0
      %v695 = vsel %vm567, %v546, 0
      %v698 = vsel %vm567, %v547, 0
      %v701 = vsel %vm567, %v548, 0
      %v704 = vsel %vm567, %v549, 0
      %v707 = vsel %vm567, %v550, 0
      %v710 = vsel %vm567, %v551, 0
      %vm712 = vcmask 1041408
      %v714 = vsel %vm712, %v564, 0
      %716 = vmatprep.subr.bf16.mxu0 0
      %717 = vmatpush1.bf16.msra.mxu0 %v562
      %718 = vmatprep.subr.bf16.mxu0 0
      %719 = vmatpush1.bf16.msra.mxu0 %v563
      %720 = vmatprep.subr.bf16.mxu0 0
      %721 = vmatpush1.bf16.msra.mxu0 %v714
      %722 = vmatprep.subr.bf16.mxu0 0
      %723 = vmatpush1.bf16.msra.mxu0 0
      %724 = vmatprep.subr.bf16.mxu0 0
      %725 = vmatpush1.bf16.msra.mxu0 0
      %726 = vmatprep.subr.bf16.mxu0 0
      %727 = vmatpush1.bf16.msra.mxu0 0
      %728 = vmatprep.subr.bf16.mxu0 0
      %729 = vmatpush1.bf16.msra.mxu0 0
      %730 = vmatprep.subr.bf16.mxu0 0
      %731 = vmatpush1.bf16.msra.mxu0 0
      %732 = vmatprep.subr.bf16.mxu0 0
      %733 = vmatpush1.bf16.msra.mxu0 0
      %734 = vmatprep.subr.bf16.mxu0 0
      %735 = vmatpush1.bf16.msra.mxu0 0
      %736 = vmatprep.subr.bf16.mxu0 0
      %737 = vmatpush1.bf16.msra.mxu0 0
      %738 = vmatprep.subr.bf16.mxu0 0
      %739 = vmatpush1.bf16.msra.mxu0 0
      %740 = vmatprep.subr.bf16.mxu0 0
      %741 = vmatpush1.bf16.msra.mxu0 0
      %742 = vmatprep.subr.bf16.mxu0 0
      %743 = vmatpush1.bf16.msra.mxu0 0
      %744 = vmatprep.subr.bf16.mxu0 0
      %745 = vmatpush1.bf16.msra.mxu0 0
      %746 = vmatprep.subr.bf16.mxu0 0
      %747 = vmatpush1.bf16.msra.mxu0 0
      %748 = vmatprep.mubr.bf16.mxu0 0
      %749 = vmatmul.mubr.bf16.gmra.mrb[0].mxu0 %v569
      %v750 = vpop.f32.mrb[0].mxu0
      %v751 = vadd.f32 %v310, %v750
      %v752 = vpop.f32.mrb[0].mxu0
      %v753 = vpop.f32.mrb[0].mxu0
      %v754 = vadd.f32 %v310, %v753
      %v755 = vpop.f32.mrb[0].mxu0
      %756 = vmatprep.mubr.bf16.mxu0 0
      %757 = vmatmul.mubr.bf16.gmra.mrb[0].mxu0 %v572
      %v758 = vpop.f32.mrb[0].mxu0
      %v759 = vadd.f32 %v310, %v758
      %v760 = vpop.f32.mrb[0].mxu0
      %v761 = vpop.f32.mrb[0].mxu0
      %v762 = vadd.f32 %v310, %v761
      %v763 = vpop.f32.mrb[0].mxu0
      %764 = vmatprep.mubr.bf16.mxu0 0
      %765 = vmatmul.mubr.bf16.gmra.mrb[0].mxu0 %v575
      %v766 = vpop.f32.mrb[0].mxu0
      %v767 = vadd.f32 %v310, %v766
      %v768 = vpop.f32.mrb[0].mxu0
      %v769 = vpop.f32.mrb[0].mxu0
      %v770 = vadd.f32 %v310, %v769
      %v771 = vpop.f32.mrb[0].mxu0
      %772 = vmatprep.mubr.bf16.mxu0 0
      %773 = vmatmul.mubr.bf16.gmra.mrb[0].mxu0 %v578
      %v774 = vpop.f32.mrb[0].mxu0
      %v775 = vadd.f32 %v310, %v774
      %v776 = vpop.f32.mrb[0].mxu0
      %v777 = vpop.f32.mrb[0].mxu0
      %v778 = vadd.f32 %v310, %v777
      %v779 = vpop.f32.mrb[0].mxu0
      %780 = vmatprep.mubr.bf16.mxu0 0
      %781 = vmatmul.mubr.bf16.gmra.mrb[0].mxu0 %v581
      %v782 = vpop.f32.mrb[0].mxu0
      %v783 = vadd.f32 %v310, %v782
      %v784 = vpop.f32.mrb[0].mxu0
      %v785 = vpop.f32.mrb[0].mxu0
      %v786 = vadd.f32 %v310, %v785
      %v787 = vpop.f32.mrb[0].mxu0
      %788 = vmatprep.mubr.bf16.mxu0 0
      %789 = vmatmul.mubr.bf16.gmra.mrb[0].mxu0 %v584
      %v790 = vpop.f32.mrb[0].mxu0
      %v791 = vadd.f32 %v310, %v790
      %v792 = vpop.f32.mrb[0].mxu0
      %v793 = vpop.f32.mrb[0].mxu0
      %v794 = vadd.f32 %v310, %v793
      %v795 = vpop.f32.mrb[0].mxu0
      %796 = vmatprep.mubr.bf16.mxu0 0
      %797 = vmatmul.mubr.bf16.gmra.mrb[0].mxu0 %v587
      %v798 = vpop.f32.mrb[0].mxu0
      %v799 = vadd.f32 %v310, %v798
      %v800 = vpop.f32.mrb[0].mxu0
      %v801 = vpop.f32.mrb[0].mxu0
      %v802 = vadd.f32 %v310, %v801
      %v803 = vpop.f32.mrb[0].mxu0
      %804 = vmatprep.mubr.bf16.mxu0 0
      %805 = vmatmul.mubr.bf16.gmra.mrb[0].mxu0 %v590
      %v806 = vpop.f32.mrb[0].mxu0
      %v807 = vadd.f32 %v310, %v806
      %v808 = vpop.f32.mrb[0].mxu0
      %v809 = vpop.f32.mrb[0].mxu0
      %v810 = vadd.f32 %v310, %v809
      %v811 = vpop.f32.mrb[0].mxu0
      %812 = vmatprep.mubr.bf16.mxu0 0
      %813 = vmatmul.mubr.bf16.gmra.mrb[0].mxu0 %v593
      %v814 = vpop.f32.mrb[0].mxu0
      %v815 = vadd.f32 %v310, %v814
      %v816 = vpop.f32.mrb[0].mxu0
      %v817 = vpop.f32.mrb[0].mxu0
      %v818 = vadd.f32 %v310, %v817
      %v819 = vpop.f32.mrb[0].mxu0
      %820 = vmatprep.mubr.bf16.mxu0 0
      %821 = vmatmul.mubr.bf16.gmra.mrb[0].mxu0 %v596
      %v822 = vpop.f32.mrb[0].mxu0
      %v823 = vadd.f32 %v310, %v822
      %v824 = vpop.f32.mrb[0].mxu0
      %v825 = vpop.f32.mrb[0].mxu0
      %v826 = vadd.f32 %v310, %v825
      %v827 = vpop.f32.mrb[0].mxu0
      %828 = vmatprep.mubr.bf16.mxu0 0
      %829 = vmatmul.mubr.bf16.gmra.mrb[0].mxu0 %v599
      %v830 = vpop.f32.mrb[0].mxu0
      %v831 = vadd.f32 %v310, %v830
      %v832 = vpop.f32.mrb[0].mxu0
      %v833 = vpop.f32.mrb[0].mxu0
      %v834 = vadd.f32 %v310, %v833
      %v835 = vpop.f32.mrb[0].mxu0
      %836 = vmatprep.mubr.bf16.mxu0 0
      %837 = vmatmul.mubr.bf16.gmra.mrb[0].mxu0 %v602
      %v838 = vpop.f32.mrb[0].mxu0
      %v839 = vadd.f32 %v310, %v838
      %v840 = vpop.f32.mrb[0].mxu0
      %v841 = vpop.f32.mrb[0].mxu0
      %v842 = vadd.f32 %v310, %v841
      %v843 = vpop.f32.mrb[0].mxu0
      %844 = vmatprep.mubr.bf16.mxu0 0
      %845 = vmatmul.mubr.bf16.gmra.mrb[0].mxu0 %v605
      %v846 = vpop.f32.mrb[0].mxu0
      %v847 = vadd.f32 %v310, %v846
      %v848 = vpop.f32.mrb[0].mxu0
      %v849 = vpop.f32.mrb[0].mxu0
      %v850 = vadd.f32 %v310, %v849
      %v851 = vpop.f32.mrb[0].mxu0
      %852 = vmatprep.mubr.bf16.mxu0 0
      %853 = vmatmul.mubr.bf16.gmra.mrb[0].mxu0 %v608
      %v854 = vpop.f32.mrb[0].mxu0
      %v855 = vadd.f32 %v310, %v854
      %v856 = vpop.f32.mrb[0].mxu0
      %v857 = vpop.f32.mrb[0].mxu0
      %v858 = vadd.f32 %v310, %v857
      %v859 = vpop.f32.mrb[0].mxu0
      %860 = vmatprep.mubr.bf16.mxu0 0
      %861 = vmatmul.mubr.bf16.gmra.mrb[0].mxu0 %v611
      %v862 = vpop.f32.mrb[0].mxu0
      %v863 = vadd.f32 %v310, %v862
      %v864 = vpop.f32.mrb[0].mxu0
      %v865 = vpop.f32.mrb[0].mxu0
      %v866 = vadd.f32 %v310, %v865
      %v867 = vpop.f32.mrb[0].mxu0
      %868 = vmatprep.mubr.bf16.mxu0 0
      %869 = vmatmul.mubr.bf16.gmra.mrb[0].mxu0 %v614
      %v870 = vpop.f32.mrb[0].mxu0
      %v871 = vadd.f32 %v310, %v870
      %v872 = vpop.f32.mrb[0].mxu0
      %v873 = vpop.f32.mrb[0].mxu0
      %v874 = vadd.f32 %v310, %v873
      %v875 = vpop.f32.mrb[0].mxu0
      %876 = vmatprep.mubr.bf16.mxu0 0
      %877 = vmatmul.mubr.bf16.gmra.mrb[0].mxu0 %v617
      %v878 = vpop.f32.mrb[0].mxu0
      %v879 = vadd.f32 %v310, %v878
      %v880 = vpop.f32.mrb[0].mxu0
      %v881 = vpop.f32.mrb[0].mxu0
      %v882 = vadd.f32 %v310, %v881
      %v883 = vpop.f32.mrb[0].mxu0
      %884 = vmatprep.mubr.bf16.mxu0 0
      %885 = vmatmul.mubr.bf16.gmra.mrb[0].mxu0 %v620
      %v886 = vpop.f32.mrb[0].mxu0
      %v887 = vadd.f32 %v310, %v886
      %v888 = vpop.f32.mrb[0].mxu0
      %v889 = vpop.f32.mrb[0].mxu0
      %v890 = vadd.f32 %v310, %v889
      %v891 = vpop.f32.mrb[0].mxu0
      %892 = vmatprep.mubr.bf16.mxu0 0
      %893 = vmatmul.mubr.bf16.gmra.mrb[0].mxu0 %v623
      %v894 = vpop.f32.mrb[0].mxu0
      %v895 = vadd.f32 %v310, %v894
      %v896 = vpop.f32.mrb[0].mxu0
      %v897 = vpop.f32.mrb[0].mxu0
      %v898 = vadd.f32 %v310, %v897
      %v899 = vpop.f32.mrb[0].mxu0
      %900 = vmatprep.mubr.bf16.mxu0 0
      %901 = vmatmul.mubr.bf16.gmra.mrb[0].mxu0 %v626
      %v902 = vpop.f32.mrb[0].mxu0
      %v903 = vadd.f32 %v310, %v902
      %v904 = vpop.f32.mrb[0].mxu0
      %v905 = vpop.f32.mrb[0].mxu0
      %v906 = vadd.f32 %v310, %v905
      %v907 = vpop.f32.mrb[0].mxu0
      %908 = vmatprep.mubr.bf16.mxu0 0
      %909 = vmatmul.mubr.bf16.gmra.mrb[0].mxu0 %v629
      %v910 = vpop.f32.mrb[0].mxu0
      %v911 = vadd.f32 %v310, %v910
      %v912 = vpop.f32.mrb[0].mxu0
      %v913 = vpop.f32.mrb[0].mxu0
      %v914 = vadd.f32 %v310, %v913
      %v915 = vpop.f32.mrb[0].mxu0
      %916 = vmatprep.mubr.bf16.mxu0 0
      %917 = vmatmul.mubr.bf16.gmra.mrb[0].mxu0 %v632
      %v918 = vpop.f32.mrb[0].mxu0
      %v919 = vadd.f32 %v310, %v918
      %v920 = vpop.f32.mrb[0].mxu0
      %v921 = vpop.f32.mrb[0].mxu0
      %v922 = vadd.f32 %v310, %v921
      %v923 = vpop.f32.mrb[0].mxu0
      %924 = vmatprep.mubr.bf16.mxu0 0
      %925 = vmatmul.mubr.bf16.gmra.mrb[0].mxu0 %v635
      %v926 = vpop.f32.mrb[0].mxu0
      %v927 = vadd.f32 %v310, %v926
      %v928 = vpop.f32.mrb[0].mxu0
      %v929 = vpop.f32.mrb[0].mxu0
      %v930 = vadd.f32 %v310, %v929
      %v931 = vpop.f32.mrb[0].mxu0
      %932 = vmatprep.mubr.bf16.mxu0 0
      %933 = vmatmul.mubr.bf16.gmra.mrb[0].mxu0 %v638
      %v934 = vpop.f32.mrb[0].mxu0
      %v935 = vadd.f32 %v310, %v934
      %v936 = vpop.f32.mrb[0].mxu0
      %v937 = vpop.f32.mrb[0].mxu0
      %v938 = vadd.f32 %v310, %v937
      %v939 = vpop.f32.mrb[0].mxu0
      %940 = vmatprep.mubr.bf16.mxu0 0
      %941 = vmatmul.mubr.bf16.gmra.mrb[0].mxu0 %v641
      %v942 = vpop.f32.mrb[0].mxu0
      %v943 = vadd.f32 %v310, %v942
      %v944 = vpop.f32.mrb[0].mxu0
      %v945 = vpop.f32.mrb[0].mxu0
      %v946 = vadd.f32 %v310, %v945
      %v947 = vpop.f32.mrb[0].mxu0
      %948 = vmatprep.mubr.bf16.mxu0 0
      %949 = vmatmul.mubr.bf16.gmra.mrb[0].mxu0 %v644
      %v950 = vpop.f32.mrb[0].mxu0
      %v951 = vadd.f32 %v310, %v950
      %v952 = vpop.f32.mrb[0].mxu0
      %v953 = vpop.f32.mrb[0].mxu0
      %v954 = vadd.f32 %v310, %v953
      %v955 = vpop.f32.mrb[0].mxu0
      %956 = vmatprep.mubr.bf16.mxu0 0
      %957 = vmatmul.mubr.bf16.gmra.mrb[0].mxu0 %v647
      %v958 = vpop.f32.mrb[0].mxu0
      %v959 = vadd.f32 %v310, %v958
      %v960 = vpop.f32.mrb[0].mxu0
      %v961 = vpop.f32.mrb[0].mxu0
      %v962 = vadd.f32 %v310, %v961
      %v963 = vpop.f32.mrb[0].mxu0
      %964 = vmatprep.mubr.bf16.mxu0 0
      %965 = vmatmul.mubr.bf16.gmra.mrb[0].mxu0 %v650
      %v966 = vpop.f32.mrb[0].mxu0
      %v967 = vadd.f32 %v310, %v966
      %v968 = vpop.f32.mrb[0].mxu0
      %v969 = vpop.f32.mrb[0].mxu0
      %v970 = vadd.f32 %v310, %v969
      %v971 = vpop.f32.mrb[0].mxu0
      %972 = vmatprep.mubr.bf16.mxu0 0
      %973 = vmatmul.mubr.bf16.gmra.mrb[0].mxu0 %v653
      %v974 = vpop.f32.mrb[0].mxu0
      %v975 = vadd.f32 %v310, %v974
      %v976 = vpop.f32.mrb[0].mxu0
      %v977 = vpop.f32.mrb[0].mxu0
      %v978 = vadd.f32 %v310, %v977
      %v979 = vpop.f32.mrb[0].mxu0
      %980 = vmatprep.mubr.bf16.mxu0 0
      %981 = vmatmul.mubr.bf16.gmra.mrb[0].mxu0 %v656
      %v982 = vpop.f32.mrb[0].mxu0
      %v983 = vadd.f32 %v310, %v982
      %v984 = vpop.f32.mrb[0].mxu0
      %v985 = vpop.f32.mrb[0].mxu0
      %v986 = vadd.f32 %v310, %v985
      %v987 = vpop.f32.mrb[0].mxu0
      %988 = vmatprep.mubr.bf16.mxu0 0
      %989 = vmatmul.mubr.bf16.gmra.mrb[0].mxu0 %v659
      %v990 = vpop.f32.mrb[0].mxu0
      %v991 = vadd.f32 %v310, %v990
      %v992 = vpop.f32.mrb[0].mxu0
      %v993 = vpop.f32.mrb[0].mxu0
      %v994 = vadd.f32 %v310, %v993
      %v995 = vpop.f32.mrb[0].mxu0
      %996 = vmatprep.mubr.bf16.mxu0 0
      %997 = vmatmul.mubr.bf16.gmra.mrb[0].mxu0 %v662
      %v998 = vpop.f32.mrb[0].mxu0
      %v999 = vadd.f32 %v310, %v998
      %v1000 = vpop.f32.mrb[0].mxu0
      %v1001 = vpop.f32.mrb[0].mxu0
      %v1002 = vadd.f32 %v310, %v1001
      %v1003 = vpop.f32.mrb[0].mxu0
      %1004 = vmatprep.mubr.bf16.mxu0 0
      %1005 = vmatmul.mubr.bf16.gmra.mrb[0].mxu0 %v665
      %v1006 = vpop.f32.mrb[0].mxu0
      %v1007 = vadd.f32 %v310, %v1006
      %v1008 = vpop.f32.mrb[0].mxu0
      %v1009 = vpop.f32.mrb[0].mxu0
      %v1010 = vadd.f32 %v310, %v1009
      %v1011 = vpop.f32.mrb[0].mxu0
      %1012 = vmatprep.mubr.bf16.mxu0 0
      %1013 = vmatmul.mubr.bf16.gmra.mrb[0].mxu0 %v668
      %v1014 = vpop.f32.mrb[0].mxu0
      %v1015 = vadd.f32 %v310, %v1014
      %v1016 = vpop.f32.mrb[0].mxu0
      %v1017 = vpop.f32.mrb[0].mxu0
      %v1018 = vadd.f32 %v310, %v1017
      %v1019 = vpop.f32.mrb[0].mxu0
      %1020 = vmatprep.mubr.bf16.mxu0 0
      %1021 = vmatmul.mubr.bf16.gmra.mrb[0].mxu0 %v671
      %v1022 = vpop.f32.mrb[0].mxu0
      %v1023 = vadd.f32 %v310, %v1022
      %v1024 = vpop.f32.mrb[0].mxu0
      %v1025 = vpop.f32.mrb[0].mxu0
      %v1026 = vadd.f32 %v310, %v1025
      %v1027 = vpop.f32.mrb[0].mxu0
      %1028 = vmatprep.mubr.bf16.mxu0 0
      %1029 = vmatmul.mubr.bf16.gmra.mrb[0].mxu0 %v674
      %v1030 = vpop.f32.mrb[0].mxu0
      %v1031 = vadd.f32 %v310, %v1030
      %v1032 = vpop.f32.mrb[0].mxu0
      %v1033 = vpop.f32.mrb[0].mxu0
      %v1034 = vadd.f32 %v310, %v1033
      %v1035 = vpop.f32.mrb[0].mxu0
      %1036 = vmatprep.mubr.bf16.mxu0 0
      %1037 = vmatmul.mubr.bf16.gmra.mrb[0].mxu0 %v677
      %v1038 = vpop.f32.mrb[0].mxu0
      %v1039 = vadd.f32 %v310, %v1038
      %v1040 = vpop.f32.mrb[0].mxu0
      %v1041 = vpop.f32.mrb[0].mxu0
      %v1042 = vadd.f32 %v310, %v1041
      %v1043 = vpop.f32.mrb[0].mxu0
      %1044 = vmatprep.mubr.bf16.mxu0 0
      %1045 = vmatmul.mubr.bf16.gmra.mrb[0].mxu0 %v680
      %v1046 = vpop.f32.mrb[0].mxu0
      %v1047 = vadd.f32 %v310, %v1046
      %v1048 = vpop.f32.mrb[0].mxu0
      %v1049 = vpop.f32.mrb[0].mxu0
      %v1050 = vadd.f32 %v310, %v1049
      %v1051 = vpop.f32.mrb[0].mxu0
      %1052 = vmatprep.mubr.bf16.mxu0 0
      %1053 = vmatmul.mubr.bf16.gmra.mrb[0].mxu0 %v683
      %v1054 = vpop.f32.mrb[0].mxu0
      %v1055 = vadd.f32 %v310, %v1054
      %v1056 = vpop.f32.mrb[0].mxu0
      %v1057 = vpop.f32.mrb[0].mxu0
      %v1058 = vadd.f32 %v310, %v1057
      %v1059 = vpop.f32.mrb[0].mxu0
      %1060 = vmatprep.mubr.bf16.mxu0 0
      %1061 = vmatmul.mubr.bf16.gmra.mrb[0].mxu0 %v686
      %v1062 = vpop.f32.mrb[0].mxu0
      %v1063 = vadd.f32 %v310, %v1062
      %v1064 = vpop.f32.mrb[0].mxu0
      %v1065 = vpop.f32.mrb[0].mxu0
      %v1066 = vadd.f32 %v310, %v1065
      %v1067 = vpop.f32.mrb[0].mxu0
      %1068 = vmatprep.mubr.bf16.mxu0 0
      %1069 = vmatmul.mubr.bf16.gmra.mrb[0].mxu0 %v689
      %v1070 = vpop.f32.mrb[0].mxu0
      %v1071 = vadd.f32 %v310, %v1070
      %v1072 = vpop.f32.mrb[0].mxu0
      %v1073 = vpop.f32.mrb[0].mxu0
      %v1074 = vadd.f32 %v310, %v1073
      %v1075 = vpop.f32.mrb[0].mxu0
      %1076 = vmatprep.mubr.bf16.mxu0 0
      %1077 = vmatmul.mubr.bf16.gmra.mrb[0].mxu0 %v692
      %v1078 = vpop.f32.mrb[0].mxu0
      %v1079 = vadd.f32 %v310, %v1078
      %v1080 = vpop.f32.mrb[0].mxu0
      %v1081 = vpop.f32.mrb[0].mxu0
      %v1082 = vadd.f32 %v310, %v1081
      %v1083 = vpop.f32.mrb[0].mxu0
      %1084 = vmatprep.mubr.bf16.mxu0 0
      %1085 = vmatmul.mubr.bf16.gmra.mrb[0].mxu0 %v695
      %v1086 = vpop.f32.mrb[0].mxu0
      %v1087 = vadd.f32 %v310, %v1086
      %v1088 = vpop.f32.mrb[0].mxu0
      %v1089 = vpop.f32.mrb[0].mxu0
      %v1090 = vadd.f32 %v310, %v1089
      %v1091 = vpop.f32.mrb[0].mxu0
      %1092 = vmatprep.mubr.bf16.mxu0 0
      %1093 = vmatmul.mubr.bf16.gmra.mrb[0].mxu0 %v698
      %v1094 = vpop.f32.mrb[0].mxu0
      %v1095 = vadd.f32 %v310, %v1094
      %v1096 = vpop.f32.mrb[0].mxu0
      %v1097 = vpop.f32.mrb[0].mxu0
      %v1098 = vadd.f32 %v310, %v1097
      %v1099 = vpop.f32.mrb[0].mxu0
      %1100 = vmatprep.mubr.bf16.mxu0 0
      %1101 = vmatmul.mubr.bf16.gmra.mrb[0].mxu0 %v701
      %v1102 = vpop.f32.mrb[0].mxu0
      %v1103 = vadd.f32 %v310, %v1102
      %v1104 = vpop.f32.mrb[0].mxu0
      %v1105 = vpop.f32.mrb[0].mxu0
      %v1106 = vadd.f32 %v310, %v1105
      %v1107 = vpop.f32.mrb[0].mxu0
      %1108 = vmatprep.mubr.bf16.mxu0 0
      %1109 = vmatmul.mubr.bf16.gmra.mrb[0].mxu0 %v704
      %v1110 = vpop.f32.mrb[0].mxu0
      %v1111 = vadd.f32 %v310, %v1110
      %v1112 = vpop.f32.mrb[0].mxu0
      %v1113 = vpop.f32.mrb[0].mxu0
      %v1114 = vadd.f32 %v310, %v1113
      %v1115 = vpop.f32.mrb[0].mxu0
      %1116 = vmatprep.mubr.bf16.mxu0 0
      %1117 = vmatmul.mubr.bf16.gmra.mrb[0].mxu0 %v707
      %v1118 = vpop.f32.mrb[0].mxu0
      %v1119 = vadd.f32 %v310, %v1118
      %v1120 = vpop.f32.mrb[0].mxu0
      %v1121 = vpop.f32.mrb[0].mxu0
      %v1122 = vadd.f32 %v310, %v1121
      %v1123 = vpop.f32.mrb[0].mxu0
      %1124 = vmatprep.mubr.bf16.mxu0 0
      %1125 = vmatmul.mubr.bf16.gmra.mrb[0].mxu0 %v710
      %v1126 = vpop.f32.mrb[0].mxu0
      %v1127 = vadd.f32 %v310, %v1126
      %v1128 = vpop.f32.mrb[0].mxu0
      %v1129 = vpop.f32.mrb[0].mxu0
      %v1130 = vadd.f32 %v310, %v1129
      %v1131 = vpop.f32.mrb[0].mxu0
      %1132 = vdwg.mxu0
      %v1133 = vmax.f32 %v751, 0.0
      %v1134 = vmax.f32 %v754, 0.0
      %v1135 = vmax.f32 %v759, 0.0
      %v1136 = vmax.f32 %v762, 0.0
      %v1137 = vmax.f32 %v767, 0.0
      %v1138 = vmax.f32 %v770, 0.0
      %v1139 = vmax.f32 %v775, 0.0
      %v1140 = vmax.f32 %v778, 0.0
      %v1141 = vmax.f32 %v783, 0.0
      %v1142 = vmax.f32 %v786, 0.0
      %v1143 = vmax.f32 %v791, 0.0
      %v1144 = vmax.f32 %v794, 0.0
      %v1145 = vmax.f32 %v799, 0.0
      %v1146 = vmax.f32 %v802, 0.0
      %v1147 = vmax.f32 %v807, 0.0
      %v1148 = vmax.f32 %v810, 0.0
      %v1149 = vmax.f32 %v815, 0.0
      %v1150 = vmax.f32 %v818, 0.0
      %v1151 = vmax.f32 %v823, 0.0
      %v1152 = vmax.f32 %v826, 0.0
      %v1153 = vmax.f32 %v831, 0.0
      %v1154 = vmax.f32 %v834, 0.0
      %v1155 = vmax.f32 %v839, 0.0
      %v1156 = vmax.f32 %v842, 0.0
      %v1157 = vmax.f32 %v847, 0.0
      %v1158 = vmax.f32 %v850, 0.0
      %v1159 = vmax.f32 %v855, 0.0
      %v1160 = vmax.f32 %v858, 0.0
      %v1161 = vmax.f32 %v863, 0.0
      %v1162 = vmax.f32 %v866, 0.0
      %v1163 = vmax.f32 %v871, 0.0
      %v1164 = vmax.f32 %v874, 0.0
      %v1165 = vmax.f32 %v879, 0.0
      %v1166 = vmax.f32 %v882, 0.0
      %v1167 = vmax.f32 %v887, 0.0
      %v1168 = vmax.f32 %v890, 0.0
      %v1169 = vmax.f32 %v895, 0.0
      %v1170 = vmax.f32 %v898, 0.0
      %v1171 = vmax.f32 %v903, 0.0
      %v1172 = vmax.f32 %v906, 0.0
      %v1173 = vmax.f32 %v911, 0.0
      %v1174 = vmax.f32 %v914, 0.0
      %v1175 = vmax.f32 %v919, 0.0
      %v1176 = vmax.f32 %v922, 0.0
      %v1177 = vmax.f32 %v927, 0.0
      %v1178 = vmax.f32 %v930, 0.0
      %v1179 = vmax.f32 %v935, 0.0
      %v1180 = vmax.f32 %v938, 0.0
      %v1181 = vmax.f32 %v943, 0.0
      %v1182 = vmax.f32 %v946, 0.0
      %v1183 = vmax.f32 %v951, 0.0
      %v1184 = vmax.f32 %v954, 0.0
      %v1185 = vmax.f32 %v959, 0.0
      %v1186 = vmax.f32 %v962, 0.0
      %v1187 = vmax.f32 %v967, 0.0
      %v1188 = vmax.f32 %v970, 0.0
      %v1189 = vmax.f32 %v975, 0.0
      %v1190 = vmax.f32 %v978, 0.0
      %v1191 = vmax.f32 %v983, 0.0
      %v1192 = vmax.f32 %v986, 0.0
      %v1193 = vmax.f32 %v991, 0.0
      %v1194 = vmax.f32 %v994, 0.0
      %v1195 = vmax.f32 %v999, 0.0
      %v1196 = vmax.f32 %v1002, 0.0
      %v1197 = vmax.f32 %v1007, 0.0
      %v1198 = vmax.f32 %v1010, 0.0
      %v1199 = vmax.f32 %v1015, 0.0
      %v1200 = vmax.f32 %v1018, 0.0
      %v1201 = vmax.f32 %v1023, 0.0
      %v1202 = vmax.f32 %v1026, 0.0
      %v1203 = vmax.f32 %v1031, 0.0
      %v1204 = vmax.f32 %v1034, 0.0
      %v1205 = vmax.f32 %v1039, 0.0
      %v1206 = vmax.f32 %v1042, 0.0
      %v1207 = vmax.f32 %v1047, 0.0
      %v1208 = vmax.f32 %v1050, 0.0
      %v1209 = vmax.f32 %v1055, 0.0
      %v1210 = vmax.f32 %v1058, 0.0
      %v1211 = vmax.f32 %v1063, 0.0
      %v1212 = vmax.f32 %v1066, 0.0
      %v1213 = vmax.f32 %v1071, 0.0
      %v1214 = vmax.f32 %v1074, 0.0
      %v1215 = vmax.f32 %v1079, 0.0
      %v1216 = vmax.f32 %v1082, 0.0
      %v1217 = vmax.f32 %v1087, 0.0
      %v1218 = vmax.f32 %v1090, 0.0
      %v1219 = vmax.f32 %v1095, 0.0
      %v1220 = vmax.f32 %v1098, 0.0
      %v1221 = vmax.f32 %v1103, 0.0
      %v1222 = vmax.f32 %v1106, 0.0
      %v1223 = vmax.f32 %v1111, 0.0
      %v1224 = vmax.f32 %v1114, 0.0
      %v1225 = vmax.f32 %v1119, 0.0
      %v1226 = vmax.f32 %v1122, 0.0
      %v1227 = vmax.f32 %v1127, 0.0
      %v1228 = vmax.f32 %v1130, 0.0
      %v1229 = vlaneseq
      %v1230 = vand.u32 %v1229, 127
      %v1231 = vadd.s32 %v1230, 128
      %v1232 = vadd.s32 %v1230, 256
      %v1233 = vadd.s32 %v1230, 384
      %v1234 = vadd.s32 %v1230, 512
      %v1235 = vadd.s32 %v1230, 640
      %s1236 = smul.u32 %s16, 768
      %v1237 = vstv %s1236
      %v1238 = vadd.s32 %v1230, %v1237
      %v1239 = vadd.s32 %v1231, %v1237
      %v1240 = vadd.s32 %v1232, %v1237
      %v1241 = vadd.s32 %v1233, %v1237
      %v1242 = vadd.s32 %v1234, %v1237
      %v1243 = vadd.s32 %v1235, %v1237
      %v1244 = vlaneseq
      %v1245 = vshrl.u32 %v1244, 7
      %v1246 = vmul.u32 %v1245, 256
      %vm1247 = vcmp.ge.s32.totalorder %v1238, %v1246
      %vm1248 = vcmp.ge.s32.totalorder %v1239, %v1246
      %vm1249 = vcmp.ge.s32.totalorder %v1240, %v1246
      %vm1250 = vcmp.ge.s32.totalorder %v1241, %v1246
      %vm1251 = vcmp.ge.s32.totalorder %v1242, %v1246
      %vm1252 = vcmp.ge.s32.totalorder %v1243, %v1246
      %v1253 = vadd.s32 %v1246, 256
      %vm1254 = vcmp.lt.s32.totalorder %v1238, %v1253
      %vm1255 = vcmp.lt.s32.totalorder %v1239, %v1253
      %vm1256 = vcmp.lt.s32.totalorder %v1240, %v1253
      %vm1257 = vcmp.lt.s32.totalorder %v1241, %v1253
      %vm1258 = vcmp.lt.s32.totalorder %v1242, %v1253
      %vm1259 = vcmp.lt.s32.totalorder %v1243, %v1253
      %vm1260 = vmand %vm1247, %vm1254
      %vm1261 = vmand %vm1248, %vm1255
      %vm1262 = vmand %vm1249, %vm1256
      %vm1263 = vmand %vm1250, %vm1257
      %vm1264 = vmand %vm1251, %vm1258
      %vm1265 = vmand %vm1252, %vm1259
      %v1266 = vsel %vm1260, 0.00390625, 0.0
      %v1267 = vsel %vm1261, 0.00390625, 0.0
      %v1268 = vsel %vm1262, 0.00390625, 0.0
      %v1269 = vsel %vm1263, 0.00390625, 0.0
      %v1270 = vsel %vm1264, 0.00390625, 0.0
      %v1271 = vsel %vm1265, 0.00390625, 0.0
      %v1272 = vld [vmem:[#allocation2] sm:$0xff]
      %1273 = vmatprep.subr.mxu0 0.0
      %1274 = vmatpush1.msra.mxu0 %v1133
      %1275 = vmatprep.subr.mxu0 0.0
      %1276 = vmatpush1.msra.mxu0 %v1134
      %1277 = vmatprep.subr.mxu0 0.0
      %1278 = vmatpush1.msra.mxu0 %v1135
      %1279 = vmatprep.subr.mxu0 0.0
      %1280 = vmatpush1.msra.mxu0 %v1136
      %1281 = vmatprep.subr.mxu0 0.0
      %1282 = vmatpush1.msra.mxu0 %v1137
      %1283 = vmatprep.subr.mxu0 0.0
      %1284 = vmatpush1.msra.mxu0 %v1138
      %1285 = vmatprep.subr.mxu0 0.0
      %1286 = vmatpush1.msra.mxu0 %v1139
      %1287 = vmatprep.subr.mxu0 0.0
      %1288 = vmatpush1.msra.mxu0 %v1140
      %1289 = vmatprep.subr.mxu0 0.0
      %1290 = vmatpush1.msra.mxu0 %v1141
      %1291 = vmatprep.subr.mxu0 0.0
      %1292 = vmatpush1.msra.mxu0 %v1142
      %1293 = vmatprep.subr.mxu0 0.0
      %1294 = vmatpush1.msra.mxu0 %v1143
      %1295 = vmatprep.subr.mxu0 0.0
      %1296 = vmatpush1.msra.mxu0 %v1144
      %1297 = vmatprep.subr.mxu0 0.0
      %1298 = vmatpush1.msra.mxu0 %v1145
      %1299 = vmatprep.subr.mxu0 0.0
      %1300 = vmatpush1.msra.mxu0 %v1146
      %1301 = vmatprep.subr.mxu0 0.0
      %1302 = vmatpush1.msra.mxu0 %v1147
      %1303 = vmatprep.subr.mxu0 0.0
      %1304 = vmatpush1.msra.mxu0 %v1148
      %1305 = vmatprep.subr.mxu0 0.0
      %1306 = vmatpush1.msra.mxu0 %v1149
      %1307 = vmatprep.subr.mxu0 0.0
      %1308 = vmatpush1.msra.mxu0 %v1150
      %1309 = vmatprep.subr.mxu0 0.0
      %1310 = vmatpush1.msra.mxu0 %v1151
      %1311 = vmatprep.subr.mxu0 0.0
      %1312 = vmatpush1.msra.mxu0 %v1152
      %1313 = vmatprep.subr.mxu0 0.0
      %1314 = vmatpush1.msra.mxu0 %v1153
      %1315 = vmatprep.subr.mxu0 0.0
      %1316 = vmatpush1.msra.mxu0 %v1154
      %1317 = vmatprep.subr.mxu0 0.0
      %1318 = vmatpush1.msra.mxu0 %v1155
      %1319 = vmatprep.subr.mxu0 0.0
      %1320 = vmatpush1.msra.mxu0 %v1156
      %1321 = vmatprep.subr.mxu0 0.0
      %1322 = vmatpush1.msra.mxu0 %v1157
      %1323 = vmatprep.subr.mxu0 0.0
      %1324 = vmatpush1.msra.mxu0 %v1158
      %1325 = vmatprep.subr.mxu0 0.0
      %1326 = vmatpush1.msra.mxu0 %v1159
      %1327 = vmatprep.subr.mxu0 0.0
      %1328 = vmatpush1.msra.mxu0 %v1160
      %1329 = vmatprep.subr.mxu0 0.0
      %1330 = vmatpush1.msra.mxu0 %v1161
      %1331 = vmatprep.subr.mxu0 0.0
      %1332 = vmatpush1.msra.mxu0 %v1162
      %1333 = vmatprep.subr.mxu0 0.0
      %1334 = vmatpush1.msra.mxu0 %v1163
      %1335 = vmatprep.subr.mxu0 0.0
      %1336 = vmatpush1.msra.mxu0 %v1164
      %1337 = vmatprep.mubr.f32.mxu0 %v1267
      %1338 = vmatmul.mubr.f32.gmra.mrb[0].mxu0 %v1266
      %v1339 = vpop.f32.mrb[0].mxu0
      %v1340 = vadd.f32 0.0, %v1339
      %v1341 = vpop.f32.mrb[0].mxu0
      %1342 = vdwg.mxu0
      %1343 = vmatprep.subr.mxu0 0.0
      %1344 = vmatpush1.msra.mxu0 %v1165
      %1345 = vmatprep.subr.mxu0 0.0
      %1346 = vmatpush1.msra.mxu0 %v1166
      %1347 = vmatprep.subr.mxu0 0.0
      %1348 = vmatpush1.msra.mxu0 %v1167
      %1349 = vmatprep.subr.mxu0 0.0
      %1350 = vmatpush1.msra.mxu0 %v1168
      %1351 = vmatprep.subr.mxu0 0.0
      %1352 = vmatpush1.msra.mxu0 %v1169
      %1353 = vmatprep.subr.mxu0 0.0
      %1354 = vmatpush1.msra.mxu0 %v1170
      %1355 = vmatprep.subr.mxu0 0.0
      %1356 = vmatpush1.msra.mxu0 %v1171
      %1357 = vmatprep.subr.mxu0 0.0
      %1358 = vmatpush1.msra.mxu0 %v1172
      %1359 = vmatprep.subr.mxu0 0.0
      %1360 = vmatpush1.msra.mxu0 %v1173
      %1361 = vmatprep.subr.mxu0 0.0
      %1362 = vmatpush1.msra.mxu0 %v1174
      %1363 = vmatprep.subr.mxu0 0.0
      %1364 = vmatpush1.msra.mxu0 %v1175
      %1365 = vmatprep.subr.mxu0 0.0
      %1366 = vmatpush1.msra.mxu0 %v1176
      %1367 = vmatprep.subr.mxu0 0.0
      %1368 = vmatpush1.msra.mxu0 %v1177
      %1369 = vmatprep.subr.mxu0 0.0
      %1370 = vmatpush1.msra.mxu0 %v1178
      %1371 = vmatprep.subr.mxu0 0.0
      %1372 = vmatpush1.msra.mxu0 %v1179
      %1373 = vmatprep.subr.mxu0 0.0
      %1374 = vmatpush1.msra.mxu0 %v1180
      %1375 = vmatprep.subr.mxu0 0.0
      %1376 = vmatpush1.msra.mxu0 %v1181
      %1377 = vmatprep.subr.mxu0 0.0
      %1378 = vmatpush1.msra.mxu0 %v1182
      %1379 = vmatprep.subr.mxu0 0.0
      %1380 = vmatpush1.msra.mxu0 %v1183
      %1381 = vmatprep.subr.mxu0 0.0
      %1382 = vmatpush1.msra.mxu0 %v1184
      %1383 = vmatprep.subr.mxu0 0.0
      %1384 = vmatpush1.msra.mxu0 %v1185
      %1385 = vmatprep.subr.mxu0 0.0
      %1386 = vmatpush1.msra.mxu0 %v1186
      %1387 = vmatprep.subr.mxu0 0.0
      %1388 = vmatpush1.msra.mxu0 %v1187
      %1389 = vmatprep.subr.mxu0 0.0
      %1390 = vmatpush1.msra.mxu0 %v1188
      %1391 = vmatprep.subr.mxu0 0.0
      %1392 = vmatpush1.msra.mxu0 %v1189
      %1393 = vmatprep.subr.mxu0 0.0
      %1394 = vmatpush1.msra.mxu0 %v1190
      %1395 = vmatprep.subr.mxu0 0.0
      %1396 = vmatpush1.msra.mxu0 %v1191
      %1397 = vmatprep.subr.mxu0 0.0
      %1398 = vmatpush1.msra.mxu0 %v1192
      %1399 = vmatprep.subr.mxu0 0.0
      %1400 = vmatpush1.msra.mxu0 %v1193
      %1401 = vmatprep.subr.mxu0 0.0
      %1402 = vmatpush1.msra.mxu0 %v1194
      %1403 = vmatprep.subr.mxu0 0.0
      %1404 = vmatpush1.msra.mxu0 %v1195
      %1405 = vmatprep.subr.mxu0 0.0
      %1406 = vmatpush1.msra.mxu0 %v1196
      %1407 = vmatprep.mubr.f32.mxu0 %v1269
      %1408 = vmatmul.mubr.f32.gmra.mrb[0].mxu0 %v1268
      %v1409 = vpop.f32.mrb[0].mxu0
      %v1410 = vadd.f32 %v1340, %v1409
      %v1411 = vpop.f32.mrb[0].mxu0
      %1412 = vdwg.mxu0
      %1413 = vmatprep.subr.mxu0 0.0
      %1414 = vmatpush1.msra.mxu0 %v1197
      %1415 = vmatprep.subr.mxu0 0.0
      %1416 = vmatpush1.msra.mxu0 %v1198
      %1417 = vmatprep.subr.mxu0 0.0
      %1418 = vmatpush1.msra.mxu0 %v1199
      %1419 = vmatprep.subr.mxu0 0.0
      %1420 = vmatpush1.msra.mxu0 %v1200
      %1421 = vmatprep.subr.mxu0 0.0
      %1422 = vmatpush1.msra.mxu0 %v1201
      %1423 = vmatprep.subr.mxu0 0.0
      %1424 = vmatpush1.msra.mxu0 %v1202
      %1425 = vmatprep.subr.mxu0 0.0
      %1426 = vmatpush1.msra.mxu0 %v1203
      %1427 = vmatprep.subr.mxu0 0.0
      %1428 = vmatpush1.msra.mxu0 %v1204
      %1429 = vmatprep.subr.mxu0 0.0
      %1430 = vmatpush1.msra.mxu0 %v1205
      %1431 = vmatprep.subr.mxu0 0.0
      %1432 = vmatpush1.msra.mxu0 %v1206
      %1433 = vmatprep.subr.mxu0 0.0
      %1434 = vmatpush1.msra.mxu0 %v1207
      %1435 = vmatprep.subr.mxu0 0.0
      %1436 = vmatpush1.msra.mxu0 %v1208
      %1437 = vmatprep.subr.mxu0 0.0
      %1438 = vmatpush1.msra.mxu0 %v1209
      %1439 = vmatprep.subr.mxu0 0.0
      %1440 = vmatpush1.msra.mxu0 %v1210
      %1441 = vmatprep.subr.mxu0 0.0
      %1442 = vmatpush1.msra.mxu0 %v1211
      %1443 = vmatprep.subr.mxu0 0.0
      %1444 = vmatpush1.msra.mxu0 %v1212
      %1445 = vmatprep.subr.mxu0 0.0
      %1446 = vmatpush1.msra.mxu0 %v1213
      %1447 = vmatprep.subr.mxu0 0.0
      %1448 = vmatpush1.msra.mxu0 %v1214
      %1449 = vmatprep.subr.mxu0 0.0
      %1450 = vmatpush1.msra.mxu0 %v1215
      %1451 = vmatprep.subr.mxu0 0.0
      %1452 = vmatpush1.msra.mxu0 %v1216
      %1453 = vmatprep.subr.mxu0 0.0
      %1454 = vmatpush1.msra.mxu0 %v1217
      %1455 = vmatprep.subr.mxu0 0.0
      %1456 = vmatpush1.msra.mxu0 %v1218
      %1457 = vmatprep.subr.mxu0 0.0
      %1458 = vmatpush1.msra.mxu0 %v1219
      %1459 = vmatprep.subr.mxu0 0.0
      %1460 = vmatpush1.msra.mxu0 %v1220
      %1461 = vmatprep.subr.mxu0 0.0
      %1462 = vmatpush1.msra.mxu0 %v1221
      %1463 = vmatprep.subr.mxu0 0.0
      %1464 = vmatpush1.msra.mxu0 %v1222
      %1465 = vmatprep.subr.mxu0 0.0
      %1466 = vmatpush1.msra.mxu0 %v1223
      %1467 = vmatprep.subr.mxu0 0.0
      %1468 = vmatpush1.msra.mxu0 %v1224
      %1469 = vmatprep.subr.mxu0 0.0
      %1470 = vmatpush1.msra.mxu0 %v1225
      %1471 = vmatprep.subr.mxu0 0.0
      %1472 = vmatpush1.msra.mxu0 %v1226
      %1473 = vmatprep.subr.mxu0 0.0
      %1474 = vmatpush1.msra.mxu0 %v1227
      %1475 = vmatprep.subr.mxu0 0.0
      %1476 = vmatpush1.msra.mxu0 %v1228
      %1477 = vmatprep.mubr.f32.mxu0 %v1271
      %1478 = vmatmul.mubr.f32.gmra.mrb[0].mxu0 %v1270
      %v1479 = vpop.f32.mrb[0].mxu0
      %v1480 = vadd.f32 %v1410, %v1479
      %v1481 = vpop.f32.mrb[0].mxu0
      %1482 = vdwg.mxu0
      %v1483 = vadd.f32 %v1272, %v1480
      %1484 = vst [vmem:[#allocation2] sm:$0xff] %v1483
      %p1485 = scmp.eq.s32.totalorder %s16, 1
      // Predicated region
      $region37: #{model_forward.1} parent=31 // pred_check
        %p1486 = pneg %p1485
      $region38: #{model_forward.1} parent=31 // pred_check_branch
        %1488 = sbr.rel (%p1486) target = $region40
      $region39: #{model_forward.1} parent=31 // pred_region
        %v1489 = vld [vmem:[#allocation2] sm:$0xff]
        %v1490 = vld [vmem:[#allocation2 + $0x8] sm:$0xff]
        %v1491 = vld [vmem:[#allocation2 + $0x10] sm:$0xff]
        %v1492 = vld [vmem:[#allocation2 + $0x18] sm:$0xff]
        %v1493 = vld [vmem:[#allocation2 + $0x20] sm:$0xff]
        %v1494 = vld [vmem:[#allocation2 + $0x28] sm:$0xff]
        %v1495 = vld [vmem:[#allocation2 + $0x30] sm:$0xff]
        %v1496 = vld [vmem:[#allocation2 + $0x38] sm:$0xff]
        %v1497 = vld [vmem:[#allocation2 + $0x40] sm:$0xff]
        %v1498 = vld [vmem:[#allocation2 + $0x48] sm:$0xff]
        %v1499 = vld [vmem:[#allocation2 + $0x50] sm:$0xff]
        %v1500 = vld [vmem:[#allocation2 + $0x58] sm:$0xff]
        %v1501 = vld [vmem:[#allocation2 + $0x60] sm:$0xff]
        %v1502 = vld [vmem:[#allocation2 + $0x68] sm:$0xff]
        %v1503 = vld [vmem:[#allocation2 + $0x70] sm:$0xff]
        %v1504 = vld [vmem:[#allocation2 + $0x78] sm:$0xff]
        %1505 = vst [vmem:[%s4] sm:$0xff] %v1489
        %1506 = vmatprep.subr.mxu0 0.0
        %1507 = vmatpush1.xpose.msra.mxu0 %v1489
        %1508 = vmatprep.subr.mxu0 0.0
        %1509 = vmatpush1.xpose.msra.mxu0 %v1490
        %1510 = vmatprep.subr.mxu0 0.0
        %1511 = vmatpush1.xpose.msra.mxu0 %v1491
        %1512 = vmatprep.subr.mxu0 0.0
        %1513 = vmatpush1.xpose.msra.mxu0 %v1492
        %1514 = vmatprep.subr.mxu0 0.0
        %1515 = vmatpush1.xpose.msra.mxu0 %v1493
        %1516 = vmatprep.subr.mxu0 0.0
        %1517 = vmatpush1.xpose.msra.mxu0 %v1494
        %1518 = vmatprep.subr.mxu0 0.0
        %1519 = vmatpush1.xpose.msra.mxu0 %v1495
        %1520 = vmatprep.subr.mxu0 0.0
        %1521 = vmatpush1.xpose.msra.mxu0 %v1496
        %1522 = vmatprep.subr.mxu0 0.0
        %1523 = vmatpush1.xpose.msra.mxu0 %v1497
        %1524 = vmatprep.subr.mxu0 0.0
        %1525 = vmatpush1.xpose.msra.mxu0 %v1498
        %1526 = vmatprep.subr.mxu0 0.0
        %1527 = vmatpush1.xpose.msra.mxu0 %v1499
        %1528 = vmatprep.subr.mxu0 0.0
        %1529 = vmatpush1.xpose.msra.mxu0 %v1500
        %1530 = vmatprep.subr.mxu0 0.0
        %1531 = vmatpush1.xpose.msra.mxu0 %v1501
        %1532 = vmatprep.subr.mxu0 0.0
        %1533 = vmatpush1.xpose.msra.mxu0 %v1502
        %1534 = vmatprep.subr.mxu0 0.0
        %1535 = vmatpush1.xpose.msra.mxu0 %v1503
        %1536 = vmatprep.subr.mxu0 0.0
        %1537 = vmatpush1.xpose.msra.mxu0 %v1504
        %1538 = vmatprep.subr.mxu0 0.0
        %1539 = vmatpush1.xpose.msra.mxu0 0.0
        %1540 = vmatprep.subr.mxu0 0.0
        %1541 = vmatpush1.xpose.msra.mxu0 0.0
        %1542 = vmatprep.subr.mxu0 0.0
        %1543 = vmatpush1.xpose.msra.mxu0 0.0
        %1544 = vmatprep.subr.mxu0 0.0
        %1545 = vmatpush1.xpose.msra.mxu0 0.0
        %1546 = vmatprep.subr.mxu0 0.0
        %1547 = vmatpush1.xpose.msra.mxu0 0.0
        %1548 = vmatprep.subr.mxu0 0.0
        %1549 = vmatpush1.xpose.msra.mxu0 0.0
        %1550 = vmatprep.subr.mxu0 0.0
        %1551 = vmatpush1.xpose.msra.mxu0 0.0
        %1552 = vmatprep.subr.mxu0 0.0
        %1553 = vmatpush1.xpose.msra.mxu0 0.0
        %1554 = vmatprep.subr.mxu0 0.0
        %1555 = vmatpush1.xpose.msra.mxu0 0.0
        %1556 = vmatprep.subr.mxu0 0.0
        %1557 = vmatpush1.xpose.msra.mxu0 0.0
        %1558 = vmatprep.subr.mxu0 0.0
        %1559 = vmatpush1.xpose.msra.mxu0 0.0
        %1560 = vmatprep.subr.mxu0 0.0
        %1561 = vmatpush1.xpose.msra.mxu0 0.0
        %1562 = vmatprep.subr.mxu0 0.0
        %1563 = vmatpush1.xpose.msra.mxu0 0.0
        %1564 = vmatprep.subr.mxu0 0.0
        %1565 = vmatpush1.xpose.msra.mxu0 0.0
        %1566 = vmatprep.subr.mxu0 0.0
        %1567 = vmatpush1.xpose.msra.mxu0 0.0
        %1568 = vmatprep.subr.mxu0 0.0
        %1569 = vmatpush1.xpose.msra.mxu0 0.0
        %1570 = vmatprep.mubr.f32.mxu0 0.0
        %1571 = vmatmul.mubr.f32.gmra.mrb[0].mxu0 %v1489
        %v1572 = vpop.f32.mrb[0].mxu0
        %v1573 = vadd.f32 0.0, %v1572
        %v1574 = vpop.f32.mrb[0].mxu0
        %1575 = vdwg.mxu0
        %1576 = vst [vmem:[%s3] sm:$0xff] %v1573
      $region40: #{model_forward.1} parent=31 // pred_fallthru
        _
      // Predicated region
      $region41: #{model_forward.1} parent=31 // pred_check
        %p1577 = pneg %p97
      $region42: #{model_forward.1} parent=31 // pred_check_branch
        %1579 = sbr.rel (%p1577) target = $region44
      $region43: #{model_forward.1} parent=31 // pred_region
        _
      $region44: #{model_forward.1} parent=31 // pred_fallthru
        _
      // Predicated region
      $region45: #{model_forward.1} parent=31 // pred_check
        %p1580 = pneg %p118
      $region46: #{model_forward.1} parent=31 // pred_check_branch
        %1582 = sbr.rel (%p1580) target = $region48
      $region47: #{model_forward.1} parent=31 // pred_region
        _
      $region48: #{model_forward.1} parent=31 // pred_fallthru
        _
      // Predicated region
      $region49: #{model_forward.1} parent=31 // pred_check
        %p1583 = pneg %p97
      $region50: #{model_forward.1} parent=31 // pred_check_branch
        %1585 = sbr.rel (%p1583) target = $region52
      $region51: #{model_forward.1} parent=31 // pred_region
        _
      $region52: #{model_forward.1} parent=31 // pred_fallthru
        _
      // Predicated region
      $region53: #{model_forward.1} parent=31 // pred_check
        %p1586 = pneg %p118
      $region54: #{model_forward.1} parent=31 // pred_check_branch
        %1588 = sbr.rel (%p1586) target = $region56
      $region55: #{model_forward.1} parent=31 // pred_region
        _
      $region56: #{model_forward.1} parent=31 // pred_fallthru
        _
    $region32: #{model_forward.1} parent=5 // pred_fallthru
      _
    %p1589 = scmp.le.s32.totalorder 2, %s11
    // Predicated region
    $region57: #{model_forward.1} parent=5 // pred_check
      %p1590 = pneg %p1589
    $region58: #{model_forward.1} parent=5 // pred_check_branch
      %1592 = sbr.rel (%p1590) target = $region60
    $region59: #{model_forward.1} parent=5 // pred_region
      %s1593 = ssub.s32 %s11, 2
    $region60: #{model_forward.1} parent=5 // pred_fallthru
      _
  $region6: #{model_forward.1} parent=0 // loop_footer
    %s15 = sadd.s32 1, %s11
  $region7: #{model_forward.1} parent=0 // loop_footer_branch
    %10 = sbr.rel target = $region3
  $region8: #{model_forward.1} parent=0 // loop_exit
    _

</llo_original>
